<compile_context>
chip_gen: v7x
topology: tpu7x:2x2x1
jax: 0.10.0
libtpu: 0.0.40
codegen_flags: <defaults>
</compile_context>

<pallas_src>
import functools
import math

import jax
import jax.numpy as jnp
from jax.experimental import pallas as pl
from jax.experimental.pallas import tpu as pltpu


def _round_up(x, m):
    return ((x + m - 1) // m) * m


def _cdiv(a, b):
    return (a + b - 1) // b


def _num_tensorcores():
    """2 for dual-TensorCore chips (v7x, v4/v5p megacore), else 1."""
    try:
        kind = jax.devices()[0].device_kind.lower()
    except Exception:
        return 1
    for tag in ("v7", "7x", "v4", "v5p"):
        if tag in kind:
            return 2
    return 1


def _choose_tiles(B, block_b, n_cores):
    """Pick (TB, B_pad, n_steps) minimizing grid steps and padded rows.

    Single step (block == full batch dim) when one core or tiny batch;
    otherwise TB must be a multiple of 128 (lane-dim BlockSpec rule) and the
    step count a multiple of the TensorCore count so both cores get work.
    """
    B8 = _round_up(max(B, 1), 8)
    if B8 <= block_b and (n_cores <= 1 or B8 <= 128):
        return B8, B8, 1
    tb_cap = max(128, (block_b // 128) * 128)
    n_steps = max(n_cores, _cdiv(B, tb_cap))
    n_steps = _round_up(n_steps, n_cores)
    TB = _round_up(_cdiv(B, n_steps), 128)
    return TB, TB * n_steps, n_steps


def _tensor_network_kernel(F, T, K, R,
                           e12_ref, wf_ref, seg_ref, w1_ref, c_ref, out_ref):
    """One batch tile per invocation (batch on lanes).

    e12_ref : (2F, TB)        bf16   [e1; e2] transposed
    wf_ref  : (2TF+T, 2F)     bf16   rows = [bilinear (c=t*F+j) | e2-replicate | block]
    seg_ref : (T, TF)         bf16   kron(I_T, ones(1, F))  (segment sum over j)
    w1_ref  : (K, T)          bf16   fc1 weight (Linear(T -> K))
    c_ref   : (4R, 1)         f32    [bias | fc1_bias | score_w | score_b] @ R-row slots
    out_ref : (1, TB)         f32    lane-dense similarity scores
    """
    TF = T * F
    e12 = e12_ref[...]                                              # (2F, TB) bf16

    # --- single fused front-end MXU pass: [a | e2_rep | block] ---------------
    front = jnp.dot(wf_ref[...], e12,
                    preferred_element_type=jnp.float32)             # (2TF+T, TB) f32
    blk = front[2 * TF:, :]                                         # (T, TB)  f32
    fr_bf = front[:2 * TF, :].astype(jnp.bfloat16)                  # one cast pass
    p = fr_bf[:TF, :] * fr_bf[TF:, :]                               # (TF, TB) bf16

    # --- segment sum over j: scoring[t,b] = sum_j p[t*F+j, b] ----------------
    scoring = jnp.dot(seg_ref[...], p,
                      preferred_element_type=jnp.float32)           # (T, TB) f32

    # --- packed constants (column vectors, lane-broadcast over batch) --------
    c = c_ref[...]                                                  # (4R, 1) f32
    bias = c[0:T, :]                                                # (T, 1)
    b1 = c[R:R + K, :]                                              # (K, 1)
    w2 = c[2 * R:2 * R + K, :]                                      # (K, 1)
    b2 = c[3 * R:3 * R + 1, :]                                      # (1, 1)

    # --- relu(scoring + block + bias) -----------------------------------------
    h = jnp.maximum(scoring + blk + bias, 0.0)                      # (T, TB) f32

    # --- fully_connected_first + relu ------------------------------------------
    z = jnp.maximum(
        jnp.dot(w1_ref[...], h.astype(jnp.bfloat16),
                preferred_element_type=jnp.float32) + b1, 0.0)      # (K, TB) f32

    # --- scoring layer: VPU multiply + sublane reduce -> lane-dense row -------
    logits = jnp.sum(z * w2, axis=0, keepdims=True) + b2            # (1, TB)
    out_ref[...] = jax.nn.sigmoid(logits)


def _xavier_uniform(key, shape, fan_in, fan_out, dtype=jnp.float32):
    bound = math.sqrt(6.0 / (fan_in + fan_out))
    return jax.random.uniform(key, shape, dtype=dtype, minval=-bound, maxval=bound)


def init_tensor_network_params(key, attention_size, n_tensor_neurons, bottleneck_size):
    """Deterministic parameter init matching the torch module's shapes."""
    F, T, K = attention_size, n_tensor_neurons, bottleneck_size
    ks = jax.random.split(key, 7)
    params = {
        "weight_matrix": _xavier_uniform(ks[0], (F, F, T), F * T, F * T),
        "weight_matrix_block": _xavier_uniform(ks[1], (T, 2 * F), 2 * F, T),
        "bias": _xavier_uniform(ks[2], (T, 1), 1, T),
        "fc1_weight": _xavier_uniform(ks[3], (K, T), T, K),   # Linear(T -> K)
        "fc1_bias": jax.random.uniform(ks[4], (K,), minval=-0.1, maxval=0.1),
        "score_weight": _xavier_uniform(ks[5], (1, K), K, 1),  # Linear(K -> 1)
        "score_bias": jax.random.uniform(ks[6], (1,), minval=-0.1, maxval=0.1),
    }
    return jax.tree_util.tree_map(lambda x: x.astype(jnp.float32), params)


def tensor_network_forward(params, embedding_1, embedding_2, *, block_b=1024):
    """embedding_1, embedding_2: (B, F, 1)  ->  returns (B,) similarity scores."""
    F = params["weight_matrix"].shape[0]
    T = params["weight_matrix"].shape[2]
    K = params["fc1_weight"].shape[0]
    B = embedding_1.shape[0]
    assert F >= 1 and T >= 1 and K >= 1
    TF = T * F

    # --- inputs: batch on lanes, bf16 for the MXU -----------------------------
    e1 = embedding_1.reshape(B, F).astype(jnp.float32)
    e2 = embedding_2.reshape(B, F).astype(jnp.float32)
    e12_t = jnp.concatenate([e1, e2], axis=1).T.astype(jnp.bfloat16)   # (2F, B)

    n_cores = _num_tensorcores()
    TB, B_pad, n_steps = _choose_tiles(B, block_b, n_cores)
    if B_pad != B:
        e12_t = jnp.pad(e12_t, ((0, 0), (0, B_pad - B)))

    # --- weight prep (glue, cheap, done once) ----------------------------------
    W = params["weight_matrix"]                                         # (F, F, T)
    # bilinear rows: row c = t*F + j, col i  ->  W[i, j, t]
    wbil = jnp.transpose(W, (2, 1, 0)).reshape(TF, F)                   # (TF, F)
    wbil = jnp.concatenate([wbil, jnp.zeros((TF, F), jnp.float32)], axis=1)   # (TF, 2F)
    # e2 replication rows: row c = t*F + j has a 1 at column F + j
    erep = jnp.concatenate([jnp.zeros((TF, F), jnp.float32),
                            jnp.tile(jnp.eye(F, dtype=jnp.float32), (T, 1))], axis=1)
    wblk = params["weight_matrix_block"]                                # (T, 2F)
    w_front = jnp.concatenate([wbil, erep, wblk], axis=0).astype(jnp.bfloat16)  # (2TF+T, 2F)

    seg_t = jnp.kron(jnp.eye(T, dtype=jnp.float32),
                     jnp.ones((1, F), jnp.float32)).astype(jnp.bfloat16)        # (T, TF)
    w1 = params["fc1_weight"].astype(jnp.bfloat16)                              # (K, T)

    # Packed small constants as column vectors at 8-aligned sublane slots.
    R = _round_up(max(T, K), 8)
    consts = jnp.zeros((4 * R, 1), jnp.float32)
    consts = consts.at[0:T, 0].set(params["bias"].reshape(T))
    consts = consts.at[R:R + K, 0].set(params["fc1_bias"])
    consts = consts.at[2 * R:2 * R + K, 0].set(params["score_weight"].reshape(K))
    consts = consts.at[3 * R, 0].set(params["score_bias"][0])

    kernel = functools.partial(_tensor_network_kernel, F, T, K, R)

    out = pl.pallas_call(
        kernel,
        out_shape=jax.ShapeDtypeStruct((1, B_pad), jnp.float32),
        grid=(n_steps,),
        in_specs=[
            pl.BlockSpec((2 * F, TB), lambda i: (0, i)),              # streamed
            pl.BlockSpec((2 * TF + T, 2 * F), lambda i: (0, 0)),      # resident
            pl.BlockSpec((T, TF), lambda i: (0, 0)),                  # resident
            pl.BlockSpec((K, T), lambda i: (0, 0)),                   # resident
            pl.BlockSpec((4 * R, 1), lambda i: (0, 0)),               # resident
        ],
        out_specs=pl.BlockSpec((1, TB), lambda i: (0, i)),            # lane-dense
        compiler_params=pltpu.CompilerParams(
            dimension_semantics=("parallel",)),
    )(e12_t, w_front, seg_t, w1, consts)

    return out[0, :B]


def _reference_forward(params, embedding_1, embedding_2):
    """Pure-JAX f32 reference mirroring the torch forward."""
    F = params["weight_matrix"].shape[0]
    T = params["weight_matrix"].shape[2]
    B = embedding_1.shape[0]
    e1 = embedding_1.astype(jnp.float32)   # (B, F, 1)
    e2 = embedding_2.astype(jnp.float32)
    scoring = jnp.matmul(jnp.transpose(e1, (0, 2, 1)),
                         params["weight_matrix"].reshape(F, -1)).reshape(B, F, T)
    scoring = jnp.matmul(jnp.transpose(scoring, (0, 2, 1)), e2)             # (B, T, 1)
    combined = jnp.concatenate([e1, e2], axis=1)                            # (B, 2F, 1)
    block = jnp.matmul(params["weight_matrix_block"], combined)             # (B, T, 1)
    scores = jax.nn.relu(scoring + block + params["bias"])                  # (B, T, 1)
    scores = jnp.transpose(scores, (0, 2, 1))                               # (B, 1, T)
    scores = jax.nn.relu(scores @ params["fc1_weight"].T + params["fc1_bias"])
    score = jax.nn.sigmoid(scores @ params["score_weight"].T + params["score_bias"])
    return score.reshape(-1)


if __name__ == "__main__":
    attention_size = 16
    n_tensor_neurons = 16
    bottleneck_size = 16
    batch = 384   # single-step on 1-TC chips, two balanced steps on 2-TC chips

    key = jax.random.PRNGKey(0)
    k_params, k_e1, k_e2 = jax.random.split(key, 3)

    params = init_tensor_network_params(
        k_params, attention_size, n_tensor_neurons, bottleneck_size)

    embedding_1 = jax.random.normal(k_e1, (batch, attention_size, 1), dtype=jnp.float32)
    embedding_2 = jax.random.normal(k_e2, (batch, attention_size, 1), dtype=jnp.float32)

    out = tensor_network_forward(params, embedding_1, embedding_2)
    out = jax.block_until_ready(out)

    ref = jax.block_until_ready(_reference_forward(params, embedding_1, embedding_2))
    assert out.shape == (batch,)
    # bf16 MXU operands vs f32 reference -> loosened tolerance (post-sigmoid).
    assert jnp.allclose(out, ref, atol=5e-2, rtol=0.0), (
        float(jnp.max(jnp.abs(out - ref))))

    print("KERNEL_OK")
</pallas_src>

<mosaic_0001>
module attributes {stable_mosaic.version = 11 : i64} {
  func.func @_tensor_network_kernel(%arg0: i32, %arg1: memref<32x384xbf16, #tpu.memory_space<vmem>>, %arg2: memref<528x32xbf16, #tpu.memory_space<vmem>>, %arg3: memref<16x256xbf16, #tpu.memory_space<vmem>>, %arg4: memref<16x16xbf16, #tpu.memory_space<vmem>>, %arg5: memref<64x1xf32, #tpu.memory_space<vmem>>, %arg6: memref<1x384xf32, #tpu.memory_space<vmem>>) attributes {dimension_semantics = [#tpu.dimension_semantics<parallel>], iteration_bounds = array<i64: 1>, scalar_prefetch = 0 : i64, scratch_operands = 0 : i64, tpu.core_type = #tpu.core_type<tc>, window_params = [{transform_indices = @transform_0, window_bounds = array<i64: 32, 384>}, {pipeline_mode = #tpu.pipeline_mode<synchronous>, transform_indices = @transform_1, window_bounds = array<i64: 528, 32>}, {pipeline_mode = #tpu.pipeline_mode<synchronous>, transform_indices = @transform_2, window_bounds = array<i64: 16, 256>}, {pipeline_mode = #tpu.pipeline_mode<synchronous>, transform_indices = @transform_3, window_bounds = array<i64: 16, 16>}, {pipeline_mode = #tpu.pipeline_mode<synchronous>, transform_indices = @transform_4, window_bounds = array<i64: 64, 1>}, {transform_indices = @transform_5, window_bounds = array<i64: 1, 384>}]} {
    %c0 = arith.constant 0 : index
    %c0_0 = arith.constant 0 : index
    %0 = vector.load %arg1[%c0, %c0_0] : memref<32x384xbf16, #tpu.memory_space<vmem>>, vector<32x384xbf16>
    %c0_1 = arith.constant 0 : index
    %c0_2 = arith.constant 0 : index
    %1 = vector.load %arg2[%c0_1, %c0_2] : memref<528x32xbf16, #tpu.memory_space<vmem>>, vector<528x32xbf16>
    %cst = arith.constant dense<0.000000e+00> : vector<528x384xf32>
    %2 = tpu.matmul %1, %0, %cst {dimension_numbers = #tpu.dot_dimension_numbers<[1], [0], [0], [1], [0, 0, 1, 1], [], []>} : vector<528x32xbf16>, vector<32x384xbf16>, vector<528x384xf32> -> vector<528x384xf32>
    %3 = vector.extract_strided_slice %2 {offsets = [512, 0], sizes = [16, 384], strides = [1, 1]} : vector<528x384xf32> to vector<16x384xf32>
    %4 = vector.extract_strided_slice %2 {offsets = [0, 0], sizes = [512, 384], strides = [1, 1]} : vector<528x384xf32> to vector<512x384xf32>
    %5 = arith.truncf %4 : vector<512x384xf32> to vector<512x384xbf16>
    %6 = vector.extract_strided_slice %5 {offsets = [0, 0], sizes = [256, 384], strides = [1, 1]} : vector<512x384xbf16> to vector<256x384xbf16>
    %7 = vector.extract_strided_slice %5 {offsets = [256, 0], sizes = [256, 384], strides = [1, 1]} : vector<512x384xbf16> to vector<256x384xbf16>
    %8 = arith.mulf %6, %7 : vector<256x384xbf16>
    %c0_3 = arith.constant 0 : index
    %c0_4 = arith.constant 0 : index
    %9 = vector.load %arg3[%c0_3, %c0_4] : memref<16x256xbf16, #tpu.memory_space<vmem>>, vector<16x256xbf16>
    %cst_5 = arith.constant dense<0.000000e+00> : vector<16x384xf32>
    %10 = tpu.matmul %9, %8, %cst_5 {dimension_numbers = #tpu.dot_dimension_numbers<[1], [0], [0], [1], [0, 0, 1, 1], [], []>} : vector<16x256xbf16>, vector<256x384xbf16>, vector<16x384xf32> -> vector<16x384xf32>
    %c0_6 = arith.constant 0 : index
    %c0_7 = arith.constant 0 : index
    %11 = vector.load %arg5[%c0_6, %c0_7] : memref<64x1xf32, #tpu.memory_space<vmem>>, vector<64x1xf32>
    %12 = vector.extract_strided_slice %11 {offsets = [0, 0], sizes = [16, 1], strides = [1, 1]} : vector<64x1xf32> to vector<16x1xf32>
    %13 = vector.extract_strided_slice %11 {offsets = [16, 0], sizes = [16, 1], strides = [1, 1]} : vector<64x1xf32> to vector<16x1xf32>
    %14 = vector.extract_strided_slice %11 {offsets = [32, 0], sizes = [16, 1], strides = [1, 1]} : vector<64x1xf32> to vector<16x1xf32>
    %15 = vector.extract_strided_slice %11 {offsets = [48, 0], sizes = [1, 1], strides = [1, 1]} : vector<64x1xf32> to vector<1x1xf32>
    %16 = arith.addf %10, %3 : vector<16x384xf32>
    %17 = vector.broadcast %12 : vector<16x1xf32> to vector<16x384xf32>
    %18 = arith.addf %16, %17 : vector<16x384xf32>
    %cst_8 = arith.constant 0.000000e+00 : f32
    %19 = vector.broadcast %cst_8 : f32 to vector<16x384xf32>
    %20 = arith.maximumf %18, %19 : vector<16x384xf32>
    %c0_9 = arith.constant 0 : index
    %c0_10 = arith.constant 0 : index
    %21 = vector.load %arg4[%c0_9, %c0_10] : memref<16x16xbf16, #tpu.memory_space<vmem>>, vector<16x16xbf16>
    %22 = arith.truncf %20 : vector<16x384xf32> to vector<16x384xbf16>
    %cst_11 = arith.constant dense<0.000000e+00> : vector<16x384xf32>
    %23 = tpu.matmul %21, %22, %cst_11 {dimension_numbers = #tpu.dot_dimension_numbers<[1], [0], [0], [1], [0, 0, 1, 1], [], []>} : vector<16x16xbf16>, vector<16x384xbf16>, vector<16x384xf32> -> vector<16x384xf32>
    %24 = vector.broadcast %13 : vector<16x1xf32> to vector<16x384xf32>
    %25 = arith.addf %23, %24 : vector<16x384xf32>
    %cst_12 = arith.constant 0.000000e+00 : f32
    %26 = vector.broadcast %cst_12 : f32 to vector<16x384xf32>
    %27 = arith.maximumf %25, %26 : vector<16x384xf32>
    %28 = vector.broadcast %14 : vector<16x1xf32> to vector<16x384xf32>
    %29 = arith.mulf %27, %28 : vector<16x384xf32>
    %cst_13 = arith.constant dense<0.000000e+00> : vector<384xf32>
    %30 = vector.multi_reduction <add>, %29, %cst_13 [0] : vector<16x384xf32> to vector<384xf32>
    %31 = vector.shape_cast %30 : vector<384xf32> to vector<1x384xf32>
    %32 = vector.broadcast %15 : vector<1x1xf32> to vector<1x384xf32>
    %33 = arith.addf %31, %32 : vector<1x384xf32>
    %34 = arith.negf %33 : vector<1x384xf32>
    %35 = math.exp %34 : vector<1x384xf32>
    %cst_14 = arith.constant 1.000000e+00 : f32
    %36 = vector.broadcast %cst_14 : f32 to vector<1x384xf32>
    %37 = arith.addf %36, %35 : vector<1x384xf32>
    %38 = arith.divf %36, %37 : vector<1x384xf32>
    %c0_15 = arith.constant 0 : index
    %c0_16 = arith.constant 0 : index
    %39 = vector.load %arg6[%c0_15, %c0_16] : memref<1x384xf32, #tpu.memory_space<vmem>>, vector<1x384xf32>
    tpu.vector_store %arg6[%c0_15, %c0_16], %38 {strides = array<i32>} : memref<1x384xf32, #tpu.memory_space<vmem>>, vector<1x384xf32>,
    return
  }
  func.func @transform_0(%arg0: i32) -> (i32, i32) {
    %c0_i32 = arith.constant 0 : i32
    %c0_i32_0 = arith.constant 0 : i32
    return %c0_i32, %arg0 : i32, i32
  }
  func.func @transform_1(%arg0: i32) -> (i32, i32) {
    %c0_i32 = arith.constant 0 : i32
    %c0_i32_0 = arith.constant 0 : i32
    %c0_i32_1 = arith.constant 0 : i32
    return %c0_i32, %c0_i32_0 : i32, i32
  }
  func.func @transform_2(%arg0: i32) -> (i32, i32) {
    %c0_i32 = arith.constant 0 : i32
    %c0_i32_0 = arith.constant 0 : i32
    %c0_i32_1 = arith.constant 0 : i32
    return %c0_i32, %c0_i32_0 : i32, i32
  }
  func.func @transform_3(%arg0: i32) -> (i32, i32) {
    %c0_i32 = arith.constant 0 : i32
    %c0_i32_0 = arith.constant 0 : i32
    %c0_i32_1 = arith.constant 0 : i32
    return %c0_i32, %c0_i32_0 : i32, i32
  }
  func.func @transform_4(%arg0: i32) -> (i32, i32) {
    %c0_i32 = arith.constant 0 : i32
    %c0_i32_0 = arith.constant 0 : i32
    %c0_i32_1 = arith.constant 0 : i32
    return %c0_i32, %c0_i32_0 : i32, i32
  }
  func.func @transform_5(%arg0: i32) -> (i32, i32) {
    %c0_i32 = arith.constant 0 : i32
    %c0_i32_0 = arith.constant 0 : i32
    return %c0_i32, %arg0 : i32, i32
  }
}

</mosaic_0001>

<llo_original>
// kernel: tpu_custom_call.1
$region0: #{tpu_custom_call.1}
  #allocation0 [shape = 'u32[]', space=smem, size = 0x4, offset = 0x4, fixed_abs, tag = 'smem constant byte address 0x4 - core index']
  #allocation1 [shape = 'u32[144,128]{1,0:T(1,128)}', space=vmem, size = 0x12000, scoped, tag = 'internal scratch']
  %s0 = inlined_call_operand.vmem [shape: bf16[32,384], index: 0, kind: input, shape index: {}]
  %s1 = inlined_call_operand.vmem [shape: bf16[528,32], index: 1, kind: input, shape index: {}]
  %s2 = inlined_call_operand.vmem [shape: bf16[16,256], index: 2, kind: input, shape index: {}]
  %s3 = inlined_call_operand.vmem [shape: bf16[16,16], index: 3, kind: input, shape index: {}]
  %s4 = inlined_call_operand.vmem [shape: f32[64,1], index: 4, kind: input, shape index: {}]
  %s5 = inlined_call_operand.hbm [shape: f32[1,384], index: 5, kind: output, shape index: {}]
  %s6 = sld [smem:[#allocation0]]
  $region30: #{tpu_custom_call.1} parent=0
    _
  %s8 = ssub.s32 1, %s6
  %s9 = scalar_select 0, %s8, %s6
  $region1: #{tpu_custom_call.1} parent=0
    #allocation2 [shape = 'u8[1536]{0}', space=vmem, size = 0x800, scoped, tag = 'output window, operand 0, single buffered']
    #allocation3 [shape = 's32[1]{0}', space=sflag, size = 0x4, scoped, tag = 'scoped memory for tpu_custom_call.1']
    %10 = vsyncpa [#allocation3], 0
    // Predicated region
    $region2: #{tpu_custom_call.1} parent=1 // pred_check
      _
    $region3: #{tpu_custom_call.1} parent=1 // pred_check_branch
      %12 = sbr.rel (0) target = $region5
    $region4: #{tpu_custom_call.1} parent=1 // pred_region
      _
    $region5: #{tpu_custom_call.1} parent=1 // pred_fallthru
      _
    // Predicated region
    $region6: #{tpu_custom_call.1} parent=1 // pred_check
      _
    $region7: #{tpu_custom_call.1} parent=1 // pred_check_branch
      %14 = sbr.rel (0) target = $region9
    $region8: #{tpu_custom_call.1} parent=1 // pred_region
      _
    $region9: #{tpu_custom_call.1} parent=1 // pred_fallthru
      _
    // Predicated region
    $region10: #{tpu_custom_call.1} parent=1 // pred_check
      _
    $region11: #{tpu_custom_call.1} parent=1 // pred_check_branch
      %16 = sbr.rel (0) target = $region13
    $region12: #{tpu_custom_call.1} parent=1 // pred_region
      _
    $region13: #{tpu_custom_call.1} parent=1 // pred_fallthru
      _
    // Predicated region
    $region14: #{tpu_custom_call.1} parent=1 // pred_check
      _
    $region15: #{tpu_custom_call.1} parent=1 // pred_check_branch
      %18 = sbr.rel (0) target = $region17
    $region16: #{tpu_custom_call.1} parent=1 // pred_region
      _
    $region17: #{tpu_custom_call.1} parent=1 // pred_fallthru
      _
    // Predicated region
    $region18: #{tpu_custom_call.1} parent=1 // pred_check
      _
    $region19: #{tpu_custom_call.1} parent=1 // pred_check_branch
      %20 = sbr.rel (0) target = $region21
    $region20: #{tpu_custom_call.1} parent=1 // pred_region
      _
    $region21: #{tpu_custom_call.1} parent=1 // pred_fallthru
      _
    %v22 = vld [vmem:[%s0] sm:$0xff]
    %v23 = vld [vmem:[%s0 + $0x8] sm:$0xf]
    %v24 = vld [vmem:[%s0 + $0xc] sm:$0xff]
    %v25 = vld [vmem:[%s0 + $0x14] sm:$0xf]
    %v26 = vld [vmem:[%s0 + $0x18] sm:$0xff]
    %v27 = vld [vmem:[%s0 + $0x20] sm:$0xf]
    %v28 = vld [vmem:[%s0 + $0x24] sm:$0xff]
    %v29 = vld [vmem:[%s0 + $0x2c] sm:$0xf]
    %v30 = vld [vmem:[%s1] sm:$0xf]
    %v31 = vld [vmem:[%s1 + $0x4] sm:$0xf]
    %v32 = vld [vmem:[%s1 + $0x8] sm:$0xf]
    %v33 = vld [vmem:[%s1 + $0xc] sm:$0xf]
    %v34 = vld [vmem:[%s1 + $0x10] sm:$0xf]
    %v35 = vld [vmem:[%s1 + $0x14] sm:$0xf]
    %v36 = vld [vmem:[%s1 + $0x18] sm:$0xf]
    %v37 = vld [vmem:[%s1 + $0x1c] sm:$0xf]
    %v38 = vld [vmem:[%s1 + $0x20] sm:$0xf]
    %v39 = vld [vmem:[%s1 + $0x24] sm:$0xf]
    %v40 = vld [vmem:[%s1 + $0x28] sm:$0xf]
    %v41 = vld [vmem:[%s1 + $0x2c] sm:$0xf]
    %v42 = vld [vmem:[%s1 + $0x30] sm:$0xf]
    %v43 = vld [vmem:[%s1 + $0x34] sm:$0xf]
    %v44 = vld [vmem:[%s1 + $0x38] sm:$0xf]
    %v45 = vld [vmem:[%s1 + $0x3c] sm:$0xf]
    %v46 = vld [vmem:[%s1 + $0x40] sm:$0xf]
    %v47 = vld [vmem:[%s1 + $0x44] sm:$0xf]
    %v48 = vld [vmem:[%s1 + $0x48] sm:$0xf]
    %v49 = vld [vmem:[%s1 + $0x4c] sm:$0xf]
    %v50 = vld [vmem:[%s1 + $0x50] sm:$0xf]
    %v51 = vld [vmem:[%s1 + $0x54] sm:$0xf]
    %v52 = vld [vmem:[%s1 + $0x58] sm:$0xf]
    %v53 = vld [vmem:[%s1 + $0x5c] sm:$0xf]
    %v54 = vld [vmem:[%s1 + $0x60] sm:$0xf]
    %v55 = vld [vmem:[%s1 + $0x64] sm:$0xf]
    %v56 = vld [vmem:[%s1 + $0x68] sm:$0xf]
    %v57 = vld [vmem:[%s1 + $0x6c] sm:$0xf]
    %v58 = vld [vmem:[%s1 + $0x70] sm:$0xf]
    %v59 = vld [vmem:[%s1 + $0x74] sm:$0xf]
    %v60 = vld [vmem:[%s1 + $0x78] sm:$0xf]
    %v61 = vld [vmem:[%s1 + $0x7c] sm:$0xf]
    %v62 = vld [vmem:[%s1 + $0x80] sm:$0xf]
    %v63 = vld [vmem:[%s1 + $0x84] sm:$0xf]
    %v64 = vld [vmem:[%s1 + $0x88] sm:$0xf]
    %v65 = vld [vmem:[%s1 + $0x8c] sm:$0xf]
    %v66 = vld [vmem:[%s1 + $0x90] sm:$0xf]
    %v67 = vld [vmem:[%s1 + $0x94] sm:$0xf]
    %v68 = vld [vmem:[%s1 + $0x98] sm:$0xf]
    %v69 = vld [vmem:[%s1 + $0x9c] sm:$0xf]
    %v70 = vld [vmem:[%s1 + $0xa0] sm:$0xf]
    %v71 = vld [vmem:[%s1 + $0xa4] sm:$0xf]
    %v72 = vld [vmem:[%s1 + $0xa8] sm:$0xf]
    %v73 = vld [vmem:[%s1 + $0xac] sm:$0xf]
    %v74 = vld [vmem:[%s1 + $0xb0] sm:$0xf]
    %v75 = vld [vmem:[%s1 + $0xb4] sm:$0xf]
    %v76 = vld [vmem:[%s1 + $0xb8] sm:$0xf]
    %v77 = vld [vmem:[%s1 + $0xbc] sm:$0xf]
    %v78 = vld [vmem:[%s1 + $0xc0] sm:$0xf]
    %v79 = vld [vmem:[%s1 + $0xc4] sm:$0xf]
    %v80 = vld [vmem:[%s1 + $0xc8] sm:$0xf]
    %v81 = vld [vmem:[%s1 + $0xcc] sm:$0xf]
    %v82 = vld [vmem:[%s1 + $0xd0] sm:$0xf]
    %v83 = vld [vmem:[%s1 + $0xd4] sm:$0xf]
    %v84 = vld [vmem:[%s1 + $0xd8] sm:$0xf]
    %v85 = vld [vmem:[%s1 + $0xdc] sm:$0xf]
    %v86 = vld [vmem:[%s1 + $0xe0] sm:$0xf]
    %v87 = vld [vmem:[%s1 + $0xe4] sm:$0xf]
    %v88 = vld [vmem:[%s1 + $0xe8] sm:$0xf]
    %v89 = vld [vmem:[%s1 + $0xec] sm:$0xf]
    %v90 = vld [vmem:[%s1 + $0xf0] sm:$0xf]
    %v91 = vld [vmem:[%s1 + $0xf4] sm:$0xf]
    %v92 = vld [vmem:[%s1 + $0xf8] sm:$0xf]
    %v93 = vld [vmem:[%s1 + $0xfc] sm:$0xf]
    %v94 = vld [vmem:[%s1 + $0x100] sm:$0xf]
    %v95 = vld [vmem:[%s1 + $0x104] sm:$0xf]
    %v162 = vunpack.c.l.b16 %v30
    %v163 = vunpack.c.l.b16 %v31
    %v164 = vunpack.c.l.b16 %v32
    %v165 = vunpack.c.l.b16 %v33
    %v166 = vunpack.c.l.b16 %v34
    %v167 = vunpack.c.l.b16 %v35
    %v168 = vunpack.c.l.b16 %v36
    %v169 = vunpack.c.l.b16 %v37
    %v170 = vunpack.c.l.b16 %v38
    %v171 = vunpack.c.l.b16 %v39
    %v172 = vunpack.c.l.b16 %v40
    %v173 = vunpack.c.l.b16 %v41
    %v174 = vunpack.c.l.b16 %v42
    %v175 = vunpack.c.l.b16 %v43
    %v176 = vunpack.c.l.b16 %v44
    %v177 = vunpack.c.l.b16 %v45
    %v178 = vunpack.c.l.b16 %v46
    %v179 = vunpack.c.l.b16 %v47
    %v180 = vunpack.c.l.b16 %v48
    %v181 = vunpack.c.l.b16 %v49
    %v182 = vunpack.c.l.b16 %v50
    %v183 = vunpack.c.l.b16 %v51
    %v184 = vunpack.c.l.b16 %v52
    %v185 = vunpack.c.l.b16 %v53
    %v186 = vunpack.c.l.b16 %v54
    %v187 = vunpack.c.l.b16 %v55
    %v188 = vunpack.c.l.b16 %v56
    %v189 = vunpack.c.l.b16 %v57
    %v190 = vunpack.c.l.b16 %v58
    %v191 = vunpack.c.l.b16 %v59
    %v192 = vunpack.c.l.b16 %v60
    %v193 = vunpack.c.l.b16 %v61
    %v194 = vunpack.c.l.b16 %v62
    %v195 = vunpack.c.l.b16 %v63
    %v196 = vunpack.c.l.b16 %v64
    %v197 = vunpack.c.l.b16 %v65
    %v198 = vunpack.c.l.b16 %v66
    %v199 = vunpack.c.l.b16 %v67
    %v200 = vunpack.c.l.b16 %v68
    %v201 = vunpack.c.l.b16 %v69
    %v202 = vunpack.c.l.b16 %v70
    %v203 = vunpack.c.l.b16 %v71
    %v204 = vunpack.c.l.b16 %v72
    %v205 = vunpack.c.l.b16 %v73
    %v206 = vunpack.c.l.b16 %v74
    %v207 = vunpack.c.l.b16 %v75
    %v208 = vunpack.c.l.b16 %v76
    %v209 = vunpack.c.l.b16 %v77
    %v210 = vunpack.c.l.b16 %v78
    %v211 = vunpack.c.l.b16 %v79
    %v212 = vunpack.c.l.b16 %v80
    %v213 = vunpack.c.l.b16 %v81
    %v214 = vunpack.c.l.b16 %v82
    %v215 = vunpack.c.l.b16 %v83
    %v216 = vunpack.c.l.b16 %v84
    %v217 = vunpack.c.l.b16 %v85
    %v218 = vunpack.c.l.b16 %v86
    %v219 = vunpack.c.l.b16 %v87
    %v220 = vunpack.c.l.b16 %v88
    %v221 = vunpack.c.l.b16 %v89
    %v222 = vunpack.c.l.b16 %v90
    %v223 = vunpack.c.l.b16 %v91
    %v224 = vunpack.c.l.b16 %v92
    %v225 = vunpack.c.l.b16 %v93
    %v226 = vunpack.c.l.b16 %v94
    %v227 = vunpack.c.l.b16 %v95
    %v228 = vpack.c.b16 %v163, %v162
    %v229 = vpack.c.b16 %v165, %v164
    %v230 = vpack.c.b16 %v167, %v166
    %v231 = vpack.c.b16 %v169, %v168
    %v232 = vpack.c.b16 %v171, %v170
    %v233 = vpack.c.b16 %v173, %v172
    %v234 = vpack.c.b16 %v175, %v174
    %v235 = vpack.c.b16 %v177, %v176
    %v236 = vpack.c.b16 %v179, %v178
    %v237 = vpack.c.b16 %v181, %v180
    %v238 = vpack.c.b16 %v183, %v182
    %v239 = vpack.c.b16 %v185, %v184
    %v240 = vpack.c.b16 %v187, %v186
    %v241 = vpack.c.b16 %v189, %v188
    %v242 = vpack.c.b16 %v191, %v190
    %v243 = vpack.c.b16 %v193, %v192
    %v244 = vpack.c.b16 %v195, %v194
    %v245 = vpack.c.b16 %v197, %v196
    %v246 = vpack.c.b16 %v199, %v198
    %v247 = vpack.c.b16 %v201, %v200
    %v248 = vpack.c.b16 %v203, %v202
    %v249 = vpack.c.b16 %v205, %v204
    %v250 = vpack.c.b16 %v207, %v206
    %v251 = vpack.c.b16 %v209, %v208
    %v252 = vpack.c.b16 %v211, %v210
    %v253 = vpack.c.b16 %v213, %v212
    %v254 = vpack.c.b16 %v215, %v214
    %v255 = vpack.c.b16 %v217, %v216
    %v256 = vpack.c.b16 %v219, %v218
    %v257 = vpack.c.b16 %v221, %v220
    %v258 = vpack.c.b16 %v223, %v222
    %v259 = vpack.c.b16 %v225, %v224
    %v260 = vpack.c.b16 %v227, %v226
    %v269 = vunpack.c.l.b16 %v22
    %v270 = vunpack.c.h.b16 %v22
    %v271 = vunpack.c.l.b16 %v23
    %v272 = vunpack.c.l.b16 %v24
    %v273 = vunpack.c.h.b16 %v24
    %v274 = vunpack.c.l.b16 %v25
    %v275 = vunpack.c.l.b16 %v26
    %v276 = vunpack.c.h.b16 %v26
    %v277 = vunpack.c.l.b16 %v27
    %v278 = vunpack.c.l.b16 %v28
    %v279 = vunpack.c.h.b16 %v28
    %v280 = vunpack.c.l.b16 %v29
    %v281 = vpack.c.b16 %v272, %v269
    %v282 = vpack.c.b16 %v273, %v270
    %v283 = vpack.c.b16 %v274, %v271
    %v284 = vpack.c.b16 %v278, %v275
    %v285 = vpack.c.b16 %v279, %v276
    %v286 = vpack.c.b16 %v280, %v277
    %vm293 = vcmask 261120
    %v295 = vsel %vm293, %v228, 0
    %v298 = vsel %vm293, %v229, 0
    %v301 = vsel %vm293, %v230, 0
    %v304 = vsel %vm293, %v231, 0
    %v307 = vsel %vm293, %v232, 0
    %v310 = vsel %vm293, %v233, 0
    %v313 = vsel %vm293, %v234, 0
    %v316 = vsel %vm293, %v235, 0
    %v319 = vsel %vm293, %v236, 0
    %v322 = vsel %vm293, %v237, 0
    %v325 = vsel %vm293, %v238, 0
    %v328 = vsel %vm293, %v239, 0
    %v331 = vsel %vm293, %v240, 0
    %v334 = vsel %vm293, %v241, 0
    %v337 = vsel %vm293, %v242, 0
    %v340 = vsel %vm293, %v243, 0
    %v343 = vsel %vm293, %v244, 0
    %v346 = vsel %vm293, %v245, 0
    %v349 = vsel %vm293, %v246, 0
    %v352 = vsel %vm293, %v247, 0
    %v355 = vsel %vm293, %v248, 0
    %v358 = vsel %vm293, %v249, 0
    %v361 = vsel %vm293, %v250, 0
    %v364 = vsel %vm293, %v251, 0
    %v367 = vsel %vm293, %v252, 0
    %v370 = vsel %vm293, %v253, 0
    %v373 = vsel %vm293, %v254, 0
    %v376 = vsel %vm293, %v255, 0
    %v379 = vsel %vm293, %v256, 0
    %v382 = vsel %vm293, %v257, 0
    %v385 = vsel %vm293, %v258, 0
    %v388 = vsel %vm293, %v259, 0
    %v391 = vsel %vm293, %v260, 0
    %393 = vmatprep.subr.bf16.mxu0 %v282
    %394 = vmatpush1.bf16.msra.mxu0 %v281
    %395 = vmatprep.subr.bf16.mxu0 %v285
    %396 = vmatpush1.bf16.msra.mxu0 %v284
    %397 = vmatprep.subr.bf16.mxu0 0
    %398 = vmatpush1.bf16.msra.mxu0 0
    %399 = vmatprep.subr.bf16.mxu0 0
    %400 = vmatpush1.bf16.msra.mxu0 0
    %401 = vmatprep.subr.bf16.mxu0 0
    %402 = vmatpush1.bf16.msra.mxu0 0
    %403 = vmatprep.subr.bf16.mxu0 0
    %404 = vmatpush1.bf16.msra.mxu0 0
    %405 = vmatprep.subr.bf16.mxu0 0
    %406 = vmatpush1.bf16.msra.mxu0 0
    %407 = vmatprep.subr.bf16.mxu0 0
    %408 = vmatpush1.bf16.msra.mxu0 0
    %409 = vmatprep.subr.bf16.mxu0 0
    %410 = vmatpush1.bf16.msra.mxu0 0
    %411 = vmatprep.subr.bf16.mxu0 0
    %412 = vmatpush1.bf16.msra.mxu0 0
    %413 = vmatprep.subr.bf16.mxu0 0
    %414 = vmatpush1.bf16.msra.mxu0 0
    %415 = vmatprep.subr.bf16.mxu0 0
    %416 = vmatpush1.bf16.msra.mxu0 0
    %417 = vmatprep.subr.bf16.mxu0 0
    %418 = vmatpush1.bf16.msra.mxu0 0
    %419 = vmatprep.subr.bf16.mxu0 0
    %420 = vmatpush1.bf16.msra.mxu0 0
    %421 = vmatprep.subr.bf16.mxu0 0
    %422 = vmatpush1.bf16.msra.mxu0 0
    %423 = vmatprep.subr.bf16.mxu0 0
    %424 = vmatpush1.bf16.msra.mxu0 0
    %425 = vmatprep.mubr.bf16.mxu0 0
    %426 = vmatmul.mubr.bf16.gmra.mrb[0].mxu0 %v295
    %v427 = vpop.f32.mrb[0].mxu0
    %v428 = vadd.f32 0.0, %v427
    %v429 = vpop.f32.mrb[0].mxu0
    %v430 = vadd.f32 0.0, %v429
    %v431 = vpop.f32.mrb[0].mxu0
    %v432 = vadd.f32 0.0, %v431
    %v433 = vpop.f32.mrb[0].mxu0
    %v434 = vadd.f32 0.0, %v433
    %435 = vmatprep.mubr.bf16.mxu0 0
    %436 = vmatmul.mubr.bf16.gmra.mrb[0].mxu0 %v298
    %v437 = vpop.f32.mrb[0].mxu0
    %v438 = vadd.f32 0.0, %v437
    %v439 = vpop.f32.mrb[0].mxu0
    %v440 = vadd.f32 0.0, %v439
    %v441 = vpop.f32.mrb[0].mxu0
    %v442 = vadd.f32 0.0, %v441
    %v443 = vpop.f32.mrb[0].mxu0
    %v444 = vadd.f32 0.0, %v443
    %445 = vmatprep.mubr.bf16.mxu0 0
    %446 = vmatmul.mubr.bf16.gmra.mrb[0].mxu0 %v301
    %v447 = vpop.f32.mrb[0].mxu0
    %v448 = vadd.f32 0.0, %v447
    %v449 = vpop.f32.mrb[0].mxu0
    %v450 = vadd.f32 0.0, %v449
    %v451 = vpop.f32.mrb[0].mxu0
    %v452 = vadd.f32 0.0, %v451
    %v453 = vpop.f32.mrb[0].mxu0
    %v454 = vadd.f32 0.0, %v453
    %455 = vmatprep.mubr.bf16.mxu0 0
    %456 = vmatmul.mubr.bf16.gmra.mrb[0].mxu0 %v304
    %v457 = vpop.f32.mrb[0].mxu0
    %v458 = vadd.f32 0.0, %v457
    %v459 = vpop.f32.mrb[0].mxu0
    %v460 = vadd.f32 0.0, %v459
    %v461 = vpop.f32.mrb[0].mxu0
    %v462 = vadd.f32 0.0, %v461
    %v463 = vpop.f32.mrb[0].mxu0
    %v464 = vadd.f32 0.0, %v463
    %465 = vmatprep.mubr.bf16.mxu0 0
    %466 = vmatmul.mubr.bf16.gmra.mrb[0].mxu0 %v307
    %v467 = vpop.f32.mrb[0].mxu0
    %v468 = vadd.f32 0.0, %v467
    %v469 = vpop.f32.mrb[0].mxu0
    %v470 = vadd.f32 0.0, %v469
    %v471 = vpop.f32.mrb[0].mxu0
    %v472 = vadd.f32 0.0, %v471
    %v473 = vpop.f32.mrb[0].mxu0
    %v474 = vadd.f32 0.0, %v473
    %475 = vmatprep.mubr.bf16.mxu0 0
    %476 = vmatmul.mubr.bf16.gmra.mrb[0].mxu0 %v310
    %v477 = vpop.f32.mrb[0].mxu0
    %v478 = vadd.f32 0.0, %v477
    %v479 = vpop.f32.mrb[0].mxu0
    %v480 = vadd.f32 0.0, %v479
    %v481 = vpop.f32.mrb[0].mxu0
    %v482 = vadd.f32 0.0, %v481
    %v483 = vpop.f32.mrb[0].mxu0
    %v484 = vadd.f32 0.0, %v483
    %485 = vmatprep.mubr.bf16.mxu0 0
    %486 = vmatmul.mubr.bf16.gmra.mrb[0].mxu0 %v313
    %v487 = vpop.f32.mrb[0].mxu0
    %v488 = vadd.f32 0.0, %v487
    %v489 = vpop.f32.mrb[0].mxu0
    %v490 = vadd.f32 0.0, %v489
    %v491 = vpop.f32.mrb[0].mxu0
    %v492 = vadd.f32 0.0, %v491
    %v493 = vpop.f32.mrb[0].mxu0
    %v494 = vadd.f32 0.0, %v493
    %495 = vmatprep.mubr.bf16.mxu0 0
    %496 = vmatmul.mubr.bf16.gmra.mrb[0].mxu0 %v316
    %v497 = vpop.f32.mrb[0].mxu0
    %v498 = vadd.f32 0.0, %v497
    %v499 = vpop.f32.mrb[0].mxu0
    %v500 = vadd.f32 0.0, %v499
    %v501 = vpop.f32.mrb[0].mxu0
    %v502 = vadd.f32 0.0, %v501
    %v503 = vpop.f32.mrb[0].mxu0
    %v504 = vadd.f32 0.0, %v503
    %505 = vmatprep.mubr.bf16.mxu0 0
    %506 = vmatmul.mubr.bf16.gmra.mrb[0].mxu0 %v319
    %v507 = vpop.f32.mrb[0].mxu0
    %v508 = vadd.f32 0.0, %v507
    %v509 = vpop.f32.mrb[0].mxu0
    %v510 = vadd.f32 0.0, %v509
    %v511 = vpop.f32.mrb[0].mxu0
    %v512 = vadd.f32 0.0, %v511
    %v513 = vpop.f32.mrb[0].mxu0
    %v514 = vadd.f32 0.0, %v513
    %515 = vmatprep.mubr.bf16.mxu0 0
    %516 = vmatmul.mubr.bf16.gmra.mrb[0].mxu0 %v322
    %v517 = vpop.f32.mrb[0].mxu0
    %v518 = vadd.f32 0.0, %v517
    %v519 = vpop.f32.mrb[0].mxu0
    %v520 = vadd.f32 0.0, %v519
    %v521 = vpop.f32.mrb[0].mxu0
    %v522 = vadd.f32 0.0, %v521
    %v523 = vpop.f32.mrb[0].mxu0
    %v524 = vadd.f32 0.0, %v523
    %525 = vmatprep.mubr.bf16.mxu0 0
    %526 = vmatmul.mubr.bf16.gmra.mrb[0].mxu0 %v325
    %v527 = vpop.f32.mrb[0].mxu0
    %v528 = vadd.f32 0.0, %v527
    %v529 = vpop.f32.mrb[0].mxu0
    %v530 = vadd.f32 0.0, %v529
    %v531 = vpop.f32.mrb[0].mxu0
    %v532 = vadd.f32 0.0, %v531
    %v533 = vpop.f32.mrb[0].mxu0
    %v534 = vadd.f32 0.0, %v533
    %535 = vmatprep.mubr.bf16.mxu0 0
    %536 = vmatmul.mubr.bf16.gmra.mrb[0].mxu0 %v328
    %v537 = vpop.f32.mrb[0].mxu0
    %v538 = vadd.f32 0.0, %v537
    %v539 = vpop.f32.mrb[0].mxu0
    %v540 = vadd.f32 0.0, %v539
    %v541 = vpop.f32.mrb[0].mxu0
    %v542 = vadd.f32 0.0, %v541
    %v543 = vpop.f32.mrb[0].mxu0
    %v544 = vadd.f32 0.0, %v543
    %545 = vmatprep.mubr.bf16.mxu0 0
    %546 = vmatmul.mubr.bf16.gmra.mrb[0].mxu0 %v331
    %v547 = vpop.f32.mrb[0].mxu0
    %v548 = vadd.f32 0.0, %v547
    %v549 = vpop.f32.mrb[0].mxu0
    %v550 = vadd.f32 0.0, %v549
    %v551 = vpop.f32.mrb[0].mxu0
    %v552 = vadd.f32 0.0, %v551
    %v553 = vpop.f32.mrb[0].mxu0
    %v554 = vadd.f32 0.0, %v553
    %555 = vmatprep.mubr.bf16.mxu0 0
    %556 = vmatmul.mubr.bf16.gmra.mrb[0].mxu0 %v334
    %v557 = vpop.f32.mrb[0].mxu0
    %v558 = vadd.f32 0.0, %v557
    %v559 = vpop.f32.mrb[0].mxu0
    %v560 = vadd.f32 0.0, %v559
    %v561 = vpop.f32.mrb[0].mxu0
    %v562 = vadd.f32 0.0, %v561
    %v563 = vpop.f32.mrb[0].mxu0
    %v564 = vadd.f32 0.0, %v563
    %565 = vmatprep.mubr.bf16.mxu0 0
    %566 = vmatmul.mubr.bf16.gmra.mrb[0].mxu0 %v337
    %v567 = vpop.f32.mrb[0].mxu0
    %v568 = vadd.f32 0.0, %v567
    %v569 = vpop.f32.mrb[0].mxu0
    %v570 = vadd.f32 0.0, %v569
    %v571 = vpop.f32.mrb[0].mxu0
    %v572 = vadd.f32 0.0, %v571
    %v573 = vpop.f32.mrb[0].mxu0
    %v574 = vadd.f32 0.0, %v573
    %575 = vmatprep.mubr.bf16.mxu0 0
    %576 = vmatmul.mubr.bf16.gmra.mrb[0].mxu0 %v340
    %v577 = vpop.f32.mrb[0].mxu0
    %v578 = vadd.f32 0.0, %v577
    %v579 = vpop.f32.mrb[0].mxu0
    %v580 = vadd.f32 0.0, %v579
    %v581 = vpop.f32.mrb[0].mxu0
    %v582 = vadd.f32 0.0, %v581
    %v583 = vpop.f32.mrb[0].mxu0
    %v584 = vadd.f32 0.0, %v583
    %585 = vmatprep.mubr.bf16.mxu0 0
    %586 = vmatmul.mubr.bf16.gmra.mrb[0].mxu0 %v343
    %v587 = vpop.f32.mrb[0].mxu0
    %v588 = vadd.f32 0.0, %v587
    %v589 = vpop.f32.mrb[0].mxu0
    %v590 = vadd.f32 0.0, %v589
    %v591 = vpop.f32.mrb[0].mxu0
    %v592 = vadd.f32 0.0, %v591
    %v593 = vpop.f32.mrb[0].mxu0
    %v594 = vadd.f32 0.0, %v593
    %595 = vmatprep.mubr.bf16.mxu0 0
    %596 = vmatmul.mubr.bf16.gmra.mrb[0].mxu0 %v346
    %v597 = vpop.f32.mrb[0].mxu0
    %v598 = vadd.f32 0.0, %v597
    %v599 = vpop.f32.mrb[0].mxu0
    %v600 = vadd.f32 0.0, %v599
    %v601 = vpop.f32.mrb[0].mxu0
    %v602 = vadd.f32 0.0, %v601
    %v603 = vpop.f32.mrb[0].mxu0
    %v604 = vadd.f32 0.0, %v603
    %605 = vmatprep.mubr.bf16.mxu0 0
    %606 = vmatmul.mubr.bf16.gmra.mrb[0].mxu0 %v349
    %v607 = vpop.f32.mrb[0].mxu0
    %v608 = vadd.f32 0.0, %v607
    %v609 = vpop.f32.mrb[0].mxu0
    %v610 = vadd.f32 0.0, %v609
    %v611 = vpop.f32.mrb[0].mxu0
    %v612 = vadd.f32 0.0, %v611
    %v613 = vpop.f32.mrb[0].mxu0
    %v614 = vadd.f32 0.0, %v613
    %615 = vmatprep.mubr.bf16.mxu0 0
    %616 = vmatmul.mubr.bf16.gmra.mrb[0].mxu0 %v352
    %v617 = vpop.f32.mrb[0].mxu0
    %v618 = vadd.f32 0.0, %v617
    %v619 = vpop.f32.mrb[0].mxu0
    %v620 = vadd.f32 0.0, %v619
    %v621 = vpop.f32.mrb[0].mxu0
    %v622 = vadd.f32 0.0, %v621
    %v623 = vpop.f32.mrb[0].mxu0
    %v624 = vadd.f32 0.0, %v623
    %625 = vmatprep.mubr.bf16.mxu0 0
    %626 = vmatmul.mubr.bf16.gmra.mrb[0].mxu0 %v355
    %v627 = vpop.f32.mrb[0].mxu0
    %v628 = vadd.f32 0.0, %v627
    %v629 = vpop.f32.mrb[0].mxu0
    %v630 = vadd.f32 0.0, %v629
    %v631 = vpop.f32.mrb[0].mxu0
    %v632 = vadd.f32 0.0, %v631
    %v633 = vpop.f32.mrb[0].mxu0
    %v634 = vadd.f32 0.0, %v633
    %635 = vmatprep.mubr.bf16.mxu0 0
    %636 = vmatmul.mubr.bf16.gmra.mrb[0].mxu0 %v358
    %v637 = vpop.f32.mrb[0].mxu0
    %v638 = vadd.f32 0.0, %v637
    %v639 = vpop.f32.mrb[0].mxu0
    %v640 = vadd.f32 0.0, %v639
    %v641 = vpop.f32.mrb[0].mxu0
    %v642 = vadd.f32 0.0, %v641
    %v643 = vpop.f32.mrb[0].mxu0
    %v644 = vadd.f32 0.0, %v643
    %645 = vmatprep.mubr.bf16.mxu0 0
    %646 = vmatmul.mubr.bf16.gmra.mrb[0].mxu0 %v361
    %v647 = vpop.f32.mrb[0].mxu0
    %v648 = vadd.f32 0.0, %v647
    %v649 = vpop.f32.mrb[0].mxu0
    %v650 = vadd.f32 0.0, %v649
    %v651 = vpop.f32.mrb[0].mxu0
    %v652 = vadd.f32 0.0, %v651
    %v653 = vpop.f32.mrb[0].mxu0
    %v654 = vadd.f32 0.0, %v653
    %655 = vmatprep.mubr.bf16.mxu0 0
    %656 = vmatmul.mubr.bf16.gmra.mrb[0].mxu0 %v364
    %v657 = vpop.f32.mrb[0].mxu0
    %v658 = vadd.f32 0.0, %v657
    %v659 = vpop.f32.mrb[0].mxu0
    %v660 = vadd.f32 0.0, %v659
    %v661 = vpop.f32.mrb[0].mxu0
    %v662 = vadd.f32 0.0, %v661
    %v663 = vpop.f32.mrb[0].mxu0
    %v664 = vadd.f32 0.0, %v663
    %665 = vmatprep.mubr.bf16.mxu0 0
    %666 = vmatmul.mubr.bf16.gmra.mrb[0].mxu0 %v367
    %v667 = vpop.f32.mrb[0].mxu0
    %v668 = vadd.f32 0.0, %v667
    %v669 = vpop.f32.mrb[0].mxu0
    %v670 = vadd.f32 0.0, %v669
    %v671 = vpop.f32.mrb[0].mxu0
    %v672 = vadd.f32 0.0, %v671
    %v673 = vpop.f32.mrb[0].mxu0
    %v674 = vadd.f32 0.0, %v673
    %675 = vmatprep.mubr.bf16.mxu0 0
    %676 = vmatmul.mubr.bf16.gmra.mrb[0].mxu0 %v370
    %v677 = vpop.f32.mrb[0].mxu0
    %v678 = vadd.f32 0.0, %v677
    %v679 = vpop.f32.mrb[0].mxu0
    %v680 = vadd.f32 0.0, %v679
    %v681 = vpop.f32.mrb[0].mxu0
    %v682 = vadd.f32 0.0, %v681
    %v683 = vpop.f32.mrb[0].mxu0
    %v684 = vadd.f32 0.0, %v683
    %685 = vmatprep.mubr.bf16.mxu0 0
    %686 = vmatmul.mubr.bf16.gmra.mrb[0].mxu0 %v373
    %v687 = vpop.f32.mrb[0].mxu0
    %v688 = vadd.f32 0.0, %v687
    %v689 = vpop.f32.mrb[0].mxu0
    %v690 = vadd.f32 0.0, %v689
    %v691 = vpop.f32.mrb[0].mxu0
    %v692 = vadd.f32 0.0, %v691
    %v693 = vpop.f32.mrb[0].mxu0
    %v694 = vadd.f32 0.0, %v693
    %695 = vmatprep.mubr.bf16.mxu0 0
    %696 = vmatmul.mubr.bf16.gmra.mrb[0].mxu0 %v376
    %v697 = vpop.f32.mrb[0].mxu0
    %v698 = vadd.f32 0.0, %v697
    %v699 = vpop.f32.mrb[0].mxu0
    %v700 = vadd.f32 0.0, %v699
    %v701 = vpop.f32.mrb[0].mxu0
    %v702 = vadd.f32 0.0, %v701
    %v703 = vpop.f32.mrb[0].mxu0
    %v704 = vadd.f32 0.0, %v703
    %705 = vmatprep.mubr.bf16.mxu0 0
    %706 = vmatmul.mubr.bf16.gmra.mrb[0].mxu0 %v379
    %v707 = vpop.f32.mrb[0].mxu0
    %v708 = vadd.f32 0.0, %v707
    %v709 = vpop.f32.mrb[0].mxu0
    %v710 = vadd.f32 0.0, %v709
    %v711 = vpop.f32.mrb[0].mxu0
    %v712 = vadd.f32 0.0, %v711
    %v713 = vpop.f32.mrb[0].mxu0
    %v714 = vadd.f32 0.0, %v713
    %715 = vmatprep.mubr.bf16.mxu0 0
    %716 = vmatmul.mubr.bf16.gmra.mrb[0].mxu0 %v382
    %v717 = vpop.f32.mrb[0].mxu0
    %v718 = vadd.f32 0.0, %v717
    %v719 = vpop.f32.mrb[0].mxu0
    %v720 = vadd.f32 0.0, %v719
    %v721 = vpop.f32.mrb[0].mxu0
    %v722 = vadd.f32 0.0, %v721
    %v723 = vpop.f32.mrb[0].mxu0
    %v724 = vadd.f32 0.0, %v723
    %725 = vmatprep.mubr.bf16.mxu0 0
    %726 = vmatmul.mubr.bf16.gmra.mrb[0].mxu0 %v385
    %v727 = vpop.f32.mrb[0].mxu0
    %v728 = vadd.f32 0.0, %v727
    %v729 = vpop.f32.mrb[0].mxu0
    %v730 = vadd.f32 0.0, %v729
    %v731 = vpop.f32.mrb[0].mxu0
    %v732 = vadd.f32 0.0, %v731
    %v733 = vpop.f32.mrb[0].mxu0
    %v734 = vadd.f32 0.0, %v733
    %735 = vmatprep.mubr.bf16.mxu0 0
    %736 = vmatmul.mubr.bf16.gmra.mrb[0].mxu0 %v388
    %v737 = vpop.f32.mrb[0].mxu0
    %v738 = vadd.f32 0.0, %v737
    %v739 = vpop.f32.mrb[0].mxu0
    %v740 = vadd.f32 0.0, %v739
    %v741 = vpop.f32.mrb[0].mxu0
    %v742 = vadd.f32 0.0, %v741
    %v743 = vpop.f32.mrb[0].mxu0
    %v744 = vadd.f32 0.0, %v743
    %745 = vmatprep.mubr.bf16.mxu0 0
    %746 = vmatmul.mubr.bf16.gmra.mrb[0].mxu0 %v391
    %v747 = vpop.f32.mrb[0].mxu0
    %v748 = vadd.f32 0.0, %v747
    %v749 = vpop.f32.mrb[0].mxu0
    %v750 = vadd.f32 0.0, %v749
    %v751 = vpop.f32.mrb[0].mxu0
    %v752 = vadd.f32 0.0, %v751
    %v753 = vpop.f32.mrb[0].mxu0
    %v754 = vadd.f32 0.0, %v753
    %755 = vdwg.mxu0
    %756 = vmatprep.subr.bf16.mxu0 0
    %757 = vmatpush1.bf16.msra.mxu0 %v283
    %758 = vmatprep.subr.bf16.mxu0 0
    %759 = vmatpush1.bf16.msra.mxu0 %v286
    %760 = vmatprep.subr.bf16.mxu0 0
    %761 = vmatpush1.bf16.msra.mxu0 0
    %762 = vmatprep.subr.bf16.mxu0 0
    %763 = vmatpush1.bf16.msra.mxu0 0
    %764 = vmatprep.subr.bf16.mxu0 0
    %765 = vmatpush1.bf16.msra.mxu0 0
    %766 = vmatprep.subr.bf16.mxu0 0
    %767 = vmatpush1.bf16.msra.mxu0 0
    %768 = vmatprep.subr.bf16.mxu0 0
    %769 = vmatpush1.bf16.msra.mxu0 0
    %770 = vmatprep.subr.bf16.mxu0 0
    %771 = vmatpush1.bf16.msra.mxu0 0
    %772 = vmatprep.subr.bf16.mxu0 0
    %773 = vmatpush1.bf16.msra.mxu0 0
    %774 = vmatprep.subr.bf16.mxu0 0
    %775 = vmatpush1.bf16.msra.mxu0 0
    %776 = vmatprep.subr.bf16.mxu0 0
    %777 = vmatpush1.bf16.msra.mxu0 0
    %778 = vmatprep.subr.bf16.mxu0 0
    %779 = vmatpush1.bf16.msra.mxu0 0
    %780 = vmatprep.subr.bf16.mxu0 0
    %781 = vmatpush1.bf16.msra.mxu0 0
    %782 = vmatprep.subr.bf16.mxu0 0
    %783 = vmatpush1.bf16.msra.mxu0 0
    %784 = vmatprep.subr.bf16.mxu0 0
    %785 = vmatpush1.bf16.msra.mxu0 0
    %786 = vmatprep.subr.bf16.mxu0 0
    %787 = vmatpush1.bf16.msra.mxu0 0
    %788 = vmatprep.mubr.bf16.mxu0 0
    %789 = vmatmul.mubr.bf16.gmra.mrb[0].mxu0 %v295
    %v790 = vpop.f32.mrb[0].mxu0
    %v791 = vadd.f32 0.0, %v790
    %v792 = vpop.f32.mrb[0].mxu0
    %v793 = vpop.f32.mrb[0].mxu0
    %v794 = vadd.f32 0.0, %v793
    %v795 = vpop.f32.mrb[0].mxu0
    %796 = vmatprep.mubr.bf16.mxu0 0
    %797 = vmatmul.mubr.bf16.gmra.mrb[0].mxu0 %v298
    %v798 = vpop.f32.mrb[0].mxu0
    %v799 = vadd.f32 0.0, %v798
    %v800 = vpop.f32.mrb[0].mxu0
    %v801 = vpop.f32.mrb[0].mxu0
    %v802 = vadd.f32 0.0, %v801
    %v803 = vpop.f32.mrb[0].mxu0
    %804 = vmatprep.mubr.bf16.mxu0 0
    %805 = vmatmul.mubr.bf16.gmra.mrb[0].mxu0 %v301
    %v806 = vpop.f32.mrb[0].mxu0
    %v807 = vadd.f32 0.0, %v806
    %v808 = vpop.f32.mrb[0].mxu0
    %v809 = vpop.f32.mrb[0].mxu0
    %v810 = vadd.f32 0.0, %v809
    %v811 = vpop.f32.mrb[0].mxu0
    %812 = vmatprep.mubr.bf16.mxu0 0
    %813 = vmatmul.mubr.bf16.gmra.mrb[0].mxu0 %v304
    %v814 = vpop.f32.mrb[0].mxu0
    %v815 = vadd.f32 0.0, %v814
    %v816 = vpop.f32.mrb[0].mxu0
    %v817 = vpop.f32.mrb[0].mxu0
    %v818 = vadd.f32 0.0, %v817
    %v819 = vpop.f32.mrb[0].mxu0
    %820 = vmatprep.mubr.bf16.mxu0 0
    %821 = vmatmul.mubr.bf16.gmra.mrb[0].mxu0 %v307
    %v822 = vpop.f32.mrb[0].mxu0
    %v823 = vadd.f32 0.0, %v822
    %v824 = vpop.f32.mrb[0].mxu0
    %v825 = vpop.f32.mrb[0].mxu0
    %v826 = vadd.f32 0.0, %v825
    %v827 = vpop.f32.mrb[0].mxu0
    %828 = vmatprep.mubr.bf16.mxu0 0
    %829 = vmatmul.mubr.bf16.gmra.mrb[0].mxu0 %v310
    %v830 = vpop.f32.mrb[0].mxu0
    %v831 = vadd.f32 0.0, %v830
    %v832 = vpop.f32.mrb[0].mxu0
    %v833 = vpop.f32.mrb[0].mxu0
    %v834 = vadd.f32 0.0, %v833
    %v835 = vpop.f32.mrb[0].mxu0
    %836 = vmatprep.mubr.bf16.mxu0 0
    %837 = vmatmul.mubr.bf16.gmra.mrb[0].mxu0 %v313
    %v838 = vpop.f32.mrb[0].mxu0
    %v839 = vadd.f32 0.0, %v838
    %v840 = vpop.f32.mrb[0].mxu0
    %v841 = vpop.f32.mrb[0].mxu0
    %v842 = vadd.f32 0.0, %v841
    %v843 = vpop.f32.mrb[0].mxu0
    %844 = vmatprep.mubr.bf16.mxu0 0
    %845 = vmatmul.mubr.bf16.gmra.mrb[0].mxu0 %v316
    %v846 = vpop.f32.mrb[0].mxu0
    %v847 = vadd.f32 0.0, %v846
    %v848 = vpop.f32.mrb[0].mxu0
    %v849 = vpop.f32.mrb[0].mxu0
    %v850 = vadd.f32 0.0, %v849
    %v851 = vpop.f32.mrb[0].mxu0
    %852 = vmatprep.mubr.bf16.mxu0 0
    %853 = vmatmul.mubr.bf16.gmra.mrb[0].mxu0 %v319
    %v854 = vpop.f32.mrb[0].mxu0
    %v855 = vadd.f32 0.0, %v854
    %v856 = vpop.f32.mrb[0].mxu0
    %v857 = vpop.f32.mrb[0].mxu0
    %v858 = vadd.f32 0.0, %v857
    %v859 = vpop.f32.mrb[0].mxu0
    %860 = vmatprep.mubr.bf16.mxu0 0
    %861 = vmatmul.mubr.bf16.gmra.mrb[0].mxu0 %v322
    %v862 = vpop.f32.mrb[0].mxu0
    %v863 = vadd.f32 0.0, %v862
    %v864 = vpop.f32.mrb[0].mxu0
    %v865 = vpop.f32.mrb[0].mxu0
    %v866 = vadd.f32 0.0, %v865
    %v867 = vpop.f32.mrb[0].mxu0
    %868 = vmatprep.mubr.bf16.mxu0 0
    %869 = vmatmul.mubr.bf16.gmra.mrb[0].mxu0 %v325
    %v870 = vpop.f32.mrb[0].mxu0
    %v871 = vadd.f32 0.0, %v870
    %v872 = vpop.f32.mrb[0].mxu0
    %v873 = vpop.f32.mrb[0].mxu0
    %v874 = vadd.f32 0.0, %v873
    %v875 = vpop.f32.mrb[0].mxu0
    %876 = vmatprep.mubr.bf16.mxu0 0
    %877 = vmatmul.mubr.bf16.gmra.mrb[0].mxu0 %v328
    %v878 = vpop.f32.mrb[0].mxu0
    %v879 = vadd.f32 0.0, %v878
    %v880 = vpop.f32.mrb[0].mxu0
    %v881 = vpop.f32.mrb[0].mxu0
    %v882 = vadd.f32 0.0, %v881
    %v883 = vpop.f32.mrb[0].mxu0
    %884 = vmatprep.mubr.bf16.mxu0 0
    %885 = vmatmul.mubr.bf16.gmra.mrb[0].mxu0 %v331
    %v886 = vpop.f32.mrb[0].mxu0
    %v887 = vadd.f32 0.0, %v886
    %v888 = vpop.f32.mrb[0].mxu0
    %v889 = vpop.f32.mrb[0].mxu0
    %v890 = vadd.f32 0.0, %v889
    %v891 = vpop.f32.mrb[0].mxu0
    %892 = vmatprep.mubr.bf16.mxu0 0
    %893 = vmatmul.mubr.bf16.gmra.mrb[0].mxu0 %v334
    %v894 = vpop.f32.mrb[0].mxu0
    %v895 = vadd.f32 0.0, %v894
    %v896 = vpop.f32.mrb[0].mxu0
    %v897 = vpop.f32.mrb[0].mxu0
    %v898 = vadd.f32 0.0, %v897
    %v899 = vpop.f32.mrb[0].mxu0
    %900 = vmatprep.mubr.bf16.mxu0 0
    %901 = vmatmul.mubr.bf16.gmra.mrb[0].mxu0 %v337
    %v902 = vpop.f32.mrb[0].mxu0
    %v903 = vadd.f32 0.0, %v902
    %v904 = vpop.f32.mrb[0].mxu0
    %v905 = vpop.f32.mrb[0].mxu0
    %v906 = vadd.f32 0.0, %v905
    %v907 = vpop.f32.mrb[0].mxu0
    %908 = vmatprep.mubr.bf16.mxu0 0
    %909 = vmatmul.mubr.bf16.gmra.mrb[0].mxu0 %v340
    %v910 = vpop.f32.mrb[0].mxu0
    %v911 = vadd.f32 0.0, %v910
    %v912 = vpop.f32.mrb[0].mxu0
    %v913 = vpop.f32.mrb[0].mxu0
    %v914 = vadd.f32 0.0, %v913
    %v915 = vpop.f32.mrb[0].mxu0
    %916 = vmatprep.mubr.bf16.mxu0 0
    %917 = vmatmul.mubr.bf16.gmra.mrb[0].mxu0 %v343
    %v918 = vpop.f32.mrb[0].mxu0
    %v919 = vadd.f32 0.0, %v918
    %v920 = vpop.f32.mrb[0].mxu0
    %v921 = vpop.f32.mrb[0].mxu0
    %v922 = vadd.f32 0.0, %v921
    %v923 = vpop.f32.mrb[0].mxu0
    %924 = vmatprep.mubr.bf16.mxu0 0
    %925 = vmatmul.mubr.bf16.gmra.mrb[0].mxu0 %v346
    %v926 = vpop.f32.mrb[0].mxu0
    %v927 = vadd.f32 0.0, %v926
    %v928 = vpop.f32.mrb[0].mxu0
    %v929 = vpop.f32.mrb[0].mxu0
    %v930 = vadd.f32 0.0, %v929
    %v931 = vpop.f32.mrb[0].mxu0
    %932 = vmatprep.mubr.bf16.mxu0 0
    %933 = vmatmul.mubr.bf16.gmra.mrb[0].mxu0 %v349
    %v934 = vpop.f32.mrb[0].mxu0
    %v935 = vadd.f32 0.0, %v934
    %v936 = vpop.f32.mrb[0].mxu0
    %v937 = vpop.f32.mrb[0].mxu0
    %v938 = vadd.f32 0.0, %v937
    %v939 = vpop.f32.mrb[0].mxu0
    %940 = vmatprep.mubr.bf16.mxu0 0
    %941 = vmatmul.mubr.bf16.gmra.mrb[0].mxu0 %v352
    %v942 = vpop.f32.mrb[0].mxu0
    %v943 = vadd.f32 0.0, %v942
    %v944 = vpop.f32.mrb[0].mxu0
    %v945 = vpop.f32.mrb[0].mxu0
    %v946 = vadd.f32 0.0, %v945
    %v947 = vpop.f32.mrb[0].mxu0
    %948 = vmatprep.mubr.bf16.mxu0 0
    %949 = vmatmul.mubr.bf16.gmra.mrb[0].mxu0 %v355
    %v950 = vpop.f32.mrb[0].mxu0
    %v951 = vadd.f32 0.0, %v950
    %v952 = vpop.f32.mrb[0].mxu0
    %v953 = vpop.f32.mrb[0].mxu0
    %v954 = vadd.f32 0.0, %v953
    %v955 = vpop.f32.mrb[0].mxu0
    %956 = vmatprep.mubr.bf16.mxu0 0
    %957 = vmatmul.mubr.bf16.gmra.mrb[0].mxu0 %v358
    %v958 = vpop.f32.mrb[0].mxu0
    %v959 = vadd.f32 0.0, %v958
    %v960 = vpop.f32.mrb[0].mxu0
    %v961 = vpop.f32.mrb[0].mxu0
    %v962 = vadd.f32 0.0, %v961
    %v963 = vpop.f32.mrb[0].mxu0
    %964 = vmatprep.mubr.bf16.mxu0 0
    %965 = vmatmul.mubr.bf16.gmra.mrb[0].mxu0 %v361
    %v966 = vpop.f32.mrb[0].mxu0
    %v967 = vadd.f32 0.0, %v966
    %v968 = vpop.f32.mrb[0].mxu0
    %v969 = vpop.f32.mrb[0].mxu0
    %v970 = vadd.f32 0.0, %v969
    %v971 = vpop.f32.mrb[0].mxu0
    %972 = vmatprep.mubr.bf16.mxu0 0
    %973 = vmatmul.mubr.bf16.gmra.mrb[0].mxu0 %v364
    %v974 = vpop.f32.mrb[0].mxu0
    %v975 = vadd.f32 0.0, %v974
    %v976 = vpop.f32.mrb[0].mxu0
    %v977 = vpop.f32.mrb[0].mxu0
    %v978 = vadd.f32 0.0, %v977
    %v979 = vpop.f32.mrb[0].mxu0
    %980 = vmatprep.mubr.bf16.mxu0 0
    %981 = vmatmul.mubr.bf16.gmra.mrb[0].mxu0 %v367
    %v982 = vpop.f32.mrb[0].mxu0
    %v983 = vadd.f32 0.0, %v982
    %v984 = vpop.f32.mrb[0].mxu0
    %v985 = vpop.f32.mrb[0].mxu0
    %v986 = vadd.f32 0.0, %v985
    %v987 = vpop.f32.mrb[0].mxu0
    %988 = vmatprep.mubr.bf16.mxu0 0
    %989 = vmatmul.mubr.bf16.gmra.mrb[0].mxu0 %v370
    %v990 = vpop.f32.mrb[0].mxu0
    %v991 = vadd.f32 0.0, %v990
    %v992 = vpop.f32.mrb[0].mxu0
    %v993 = vpop.f32.mrb[0].mxu0
    %v994 = vadd.f32 0.0, %v993
    %v995 = vpop.f32.mrb[0].mxu0
    %996 = vmatprep.mubr.bf16.mxu0 0
    %997 = vmatmul.mubr.bf16.gmra.mrb[0].mxu0 %v373
    %v998 = vpop.f32.mrb[0].mxu0
    %v999 = vadd.f32 0.0, %v998
    %v1000 = vpop.f32.mrb[0].mxu0
    %v1001 = vpop.f32.mrb[0].mxu0
    %v1002 = vadd.f32 0.0, %v1001
    %v1003 = vpop.f32.mrb[0].mxu0
    %1004 = vmatprep.mubr.bf16.mxu0 0
    %1005 = vmatmul.mubr.bf16.gmra.mrb[0].mxu0 %v376
    %v1006 = vpop.f32.mrb[0].mxu0
    %v1007 = vadd.f32 0.0, %v1006
    %v1008 = vpop.f32.mrb[0].mxu0
    %v1009 = vpop.f32.mrb[0].mxu0
    %v1010 = vadd.f32 0.0, %v1009
    %v1011 = vpop.f32.mrb[0].mxu0
    %1012 = vmatprep.mubr.bf16.mxu0 0
    %1013 = vmatmul.mubr.bf16.gmra.mrb[0].mxu0 %v379
    %v1014 = vpop.f32.mrb[0].mxu0
    %v1015 = vadd.f32 0.0, %v1014
    %v1016 = vpop.f32.mrb[0].mxu0
    %v1017 = vpop.f32.mrb[0].mxu0
    %v1018 = vadd.f32 0.0, %v1017
    %v1019 = vpop.f32.mrb[0].mxu0
    %1020 = vmatprep.mubr.bf16.mxu0 0
    %1021 = vmatmul.mubr.bf16.gmra.mrb[0].mxu0 %v382
    %v1022 = vpop.f32.mrb[0].mxu0
    %v1023 = vadd.f32 0.0, %v1022
    %v1024 = vpop.f32.mrb[0].mxu0
    %v1025 = vpop.f32.mrb[0].mxu0
    %v1026 = vadd.f32 0.0, %v1025
    %v1027 = vpop.f32.mrb[0].mxu0
    %1028 = vmatprep.mubr.bf16.mxu0 0
    %1029 = vmatmul.mubr.bf16.gmra.mrb[0].mxu0 %v385
    %v1030 = vpop.f32.mrb[0].mxu0
    %v1031 = vadd.f32 0.0, %v1030
    %v1032 = vpop.f32.mrb[0].mxu0
    %v1033 = vpop.f32.mrb[0].mxu0
    %v1034 = vadd.f32 0.0, %v1033
    %v1035 = vpop.f32.mrb[0].mxu0
    %1036 = vmatprep.mubr.bf16.mxu0 0
    %1037 = vmatmul.mubr.bf16.gmra.mrb[0].mxu0 %v388
    %v1038 = vpop.f32.mrb[0].mxu0
    %v1039 = vadd.f32 0.0, %v1038
    %v1040 = vpop.f32.mrb[0].mxu0
    %v1041 = vpop.f32.mrb[0].mxu0
    %v1042 = vadd.f32 0.0, %v1041
    %v1043 = vpop.f32.mrb[0].mxu0
    %1044 = vmatprep.mubr.bf16.mxu0 0
    %1045 = vmatmul.mubr.bf16.gmra.mrb[0].mxu0 %v391
    %v1046 = vpop.f32.mrb[0].mxu0
    %v1047 = vadd.f32 0.0, %v1046
    %v1048 = vpop.f32.mrb[0].mxu0
    %v1049 = vpop.f32.mrb[0].mxu0
    %v1050 = vadd.f32 0.0, %v1049
    %v1051 = vpop.f32.mrb[0].mxu0
    %1052 = vdwg.mxu0
    %v1053 = vpack.c.bf16 %v432, %v428
    %v1054 = vpack.c.bf16 %v434, %v430
    %v1055 = vpack.c.bf16 %v794, %v791
    %v1056 = vpack.c.bf16 %v442, %v438
    %v1057 = vpack.c.bf16 %v444, %v440
    %v1058 = vpack.c.bf16 %v802, %v799
    %v1059 = vpack.c.bf16 %v452, %v448
    %v1060 = vpack.c.bf16 %v454, %v450
    %v1061 = vpack.c.bf16 %v810, %v807
    %v1062 = vpack.c.bf16 %v462, %v458
    %v1063 = vpack.c.bf16 %v464, %v460
    %v1064 = vpack.c.bf16 %v818, %v815
    %v1065 = vpack.c.bf16 %v472, %v468
    %v1066 = vpack.c.bf16 %v474, %v470
    %v1067 = vpack.c.bf16 %v826, %v823
    %v1068 = vpack.c.bf16 %v482, %v478
    %v1069 = vpack.c.bf16 %v484, %v480
    %v1070 = vpack.c.bf16 %v834, %v831
    %v1071 = vpack.c.bf16 %v492, %v488
    %v1072 = vpack.c.bf16 %v494, %v490
    %v1073 = vpack.c.bf16 %v842, %v839
    %v1074 = vpack.c.bf16 %v502, %v498
    %v1075 = vpack.c.bf16 %v504, %v500
    %v1076 = vpack.c.bf16 %v850, %v847
    %v1077 = vpack.c.bf16 %v512, %v508
    %v1078 = vpack.c.bf16 %v514, %v510
    %v1079 = vpack.c.bf16 %v858, %v855
    %v1080 = vpack.c.bf16 %v522, %v518
    %v1081 = vpack.c.bf16 %v524, %v520
    %v1082 = vpack.c.bf16 %v866, %v863
    %v1083 = vpack.c.bf16 %v532, %v528
    %v1084 = vpack.c.bf16 %v534, %v530
    %v1085 = vpack.c.bf16 %v874, %v871
    %v1086 = vpack.c.bf16 %v542, %v538
    %v1087 = vpack.c.bf16 %v544, %v540
    %v1088 = vpack.c.bf16 %v882, %v879
    %v1089 = vpack.c.bf16 %v552, %v548
    %v1090 = vpack.c.bf16 %v554, %v550
    %v1091 = vpack.c.bf16 %v890, %v887
    %v1092 = vpack.c.bf16 %v562, %v558
    %v1093 = vpack.c.bf16 %v564, %v560
    %v1094 = vpack.c.bf16 %v898, %v895
    %v1095 = vpack.c.bf16 %v572, %v568
    %v1096 = vpack.c.bf16 %v574, %v570
    %v1097 = vpack.c.bf16 %v906, %v903
    %v1098 = vpack.c.bf16 %v582, %v578
    %v1099 = vpack.c.bf16 %v584, %v580
    %v1100 = vpack.c.bf16 %v914, %v911
    %v1101 = vpack.c.bf16 %v592, %v588
    %v1102 = vpack.c.bf16 %v594, %v590
    %v1103 = vpack.c.bf16 %v922, %v919
    %v1104 = vpack.c.bf16 %v602, %v598
    %v1105 = vpack.c.bf16 %v604, %v600
    %v1106 = vpack.c.bf16 %v930, %v927
    %v1107 = vpack.c.bf16 %v612, %v608
    %v1108 = vpack.c.bf16 %v614, %v610
    %v1109 = vpack.c.bf16 %v938, %v935
    %v1110 = vpack.c.bf16 %v622, %v618
    %v1111 = vpack.c.bf16 %v624, %v620
    %v1112 = vpack.c.bf16 %v946, %v943
    %v1113 = vpack.c.bf16 %v632, %v628
    %v1114 = vpack.c.bf16 %v634, %v630
    %v1115 = vpack.c.bf16 %v954, %v951
    %v1116 = vpack.c.bf16 %v642, %v638
    %v1117 = vpack.c.bf16 %v644, %v640
    %v1118 = vpack.c.bf16 %v962, %v959
    %v1119 = vpack.c.bf16 %v652, %v648
    %v1120 = vpack.c.bf16 %v654, %v650
    %v1121 = vpack.c.bf16 %v970, %v967
    %v1122 = vpack.c.bf16 %v662, %v658
    %v1123 = vpack.c.bf16 %v664, %v660
    %v1124 = vpack.c.bf16 %v978, %v975
    %v1125 = vpack.c.bf16 %v672, %v668
    %v1126 = vpack.c.bf16 %v674, %v670
    %v1127 = vpack.c.bf16 %v986, %v983
    %v1128 = vpack.c.bf16 %v682, %v678
    %v1129 = vpack.c.bf16 %v684, %v680
    %v1130 = vpack.c.bf16 %v994, %v991
    %v1131 = vpack.c.bf16 %v692, %v688
    %v1132 = vpack.c.bf16 %v694, %v690
    %v1133 = vpack.c.bf16 %v1002, %v999
    %v1134 = vpack.c.bf16 %v702, %v698
    %v1135 = vpack.c.bf16 %v704, %v700
    %v1136 = vpack.c.bf16 %v1010, %v1007
    %v1137 = vpack.c.bf16 %v712, %v708
    %v1138 = vpack.c.bf16 %v714, %v710
    %v1139 = vpack.c.bf16 %v1018, %v1015
    %v1140 = vpack.c.bf16 %v722, %v718
    %v1141 = vpack.c.bf16 %v724, %v720
    %v1142 = vpack.c.bf16 %v1026, %v1023
    %v1143 = vpack.c.bf16 %v732, %v728
    %v1144 = vpack.c.bf16 %v734, %v730
    %v1145 = vpack.c.bf16 %v1034, %v1031
    %v1146 = vpack.c.bf16 %v742, %v738
    %v1147 = vpack.c.bf16 %v744, %v740
    %v1148 = vpack.c.bf16 %v1042, %v1039
    %v1149 = vmul.bf16 %v1053, %v1101
    %v1150 = vmul.bf16 %v1054, %v1102
    %v1151 = vmul.bf16 %v1055, %v1103
    %v1152 = vmul.bf16 %v1056, %v1104
    %v1153 = vmul.bf16 %v1057, %v1105
    %v1154 = vmul.bf16 %v1058, %v1106
    %v1155 = vmul.bf16 %v1059, %v1107
    %v1156 = vmul.bf16 %v1060, %v1108
    %v1157 = vmul.bf16 %v1061, %v1109
    %v1158 = vmul.bf16 %v1062, %v1110
    %v1159 = vmul.bf16 %v1063, %v1111
    %v1160 = vmul.bf16 %v1064, %v1112
    %v1161 = vmul.bf16 %v1065, %v1113
    %v1162 = vmul.bf16 %v1066, %v1114
    %v1163 = vmul.bf16 %v1067, %v1115
    %v1164 = vmul.bf16 %v1068, %v1116
    %v1165 = vmul.bf16 %v1069, %v1117
    %v1166 = vmul.bf16 %v1070, %v1118
    %v1167 = vmul.bf16 %v1071, %v1119
    %v1168 = vmul.bf16 %v1072, %v1120
    %v1169 = vmul.bf16 %v1073, %v1121
    %v1170 = vmul.bf16 %v1074, %v1122
    %v1171 = vmul.bf16 %v1075, %v1123
    %v1172 = vmul.bf16 %v1076, %v1124
    %v1173 = vmul.bf16 %v1077, %v1125
    %v1174 = vmul.bf16 %v1078, %v1126
    %v1175 = vmul.bf16 %v1079, %v1127
    %v1176 = vmul.bf16 %v1080, %v1128
    %v1177 = vmul.bf16 %v1081, %v1129
    %v1178 = vmul.bf16 %v1082, %v1130
    %v1179 = vmul.bf16 %v1083, %v1131
    %v1180 = vmul.bf16 %v1084, %v1132
    %v1181 = vmul.bf16 %v1085, %v1133
    %v1182 = vmul.bf16 %v1086, %v1134
    %v1183 = vmul.bf16 %v1087, %v1135
    %v1184 = vmul.bf16 %v1088, %v1136
    %v1185 = vmul.bf16 %v1089, %v1137
    %v1186 = vmul.bf16 %v1090, %v1138
    %v1187 = vmul.bf16 %v1091, %v1139
    %v1188 = vmul.bf16 %v1092, %v1140
    %v1189 = vmul.bf16 %v1093, %v1141
    %v1190 = vmul.bf16 %v1094, %v1142
    %v1191 = vmul.bf16 %v1095, %v1143
    %v1192 = vmul.bf16 %v1096, %v1144
    %v1193 = vmul.bf16 %v1097, %v1145
    %v1194 = vmul.bf16 %v1098, %v1146
    %v1195 = vmul.bf16 %v1099, %v1147
    %v1196 = vmul.bf16 %v1100, %v1148
    %v1197 = vld [vmem:[%s2] sm:$0xff]
    %v1198 = vld [vmem:[%s2 + $0x8] sm:$0xff]
    %v1199 = vld [vmem:[%s4] sm:$0xff]
    %v1200 = vld [vmem:[%s4 + $0x8] sm:$0xff]
    %v1201 = vld [vmem:[%s4 + $0x10] sm:$0xff]
    %v1202 = vld [vmem:[%s4 + $0x18] sm:$0xff]
    %v1203 = vld [vmem:[%s4 + $0x20] sm:$0xff]
    %v1204 = vld [vmem:[%s4 + $0x28] sm:$0xff]
    %v1205 = vld [vmem:[%s4 + $0x30] sm:$0xff]
    %v1208 = vunpack.c.l.b16 %v1197
    %v1209 = vunpack.c.h.b16 %v1197
    %v1210 = vunpack.c.l.b16 %v1198
    %v1211 = vunpack.c.h.b16 %v1198
    %v1212 = vpack.c.b16 %v1210, %v1208
    %v1213 = vpack.c.b16 %v1211, %v1209
    %1216 = vmatprep.subr.bf16.mxu0 %v1150
    %1217 = vmatpush1.bf16.msra.mxu0 %v1149
    %1218 = vmatprep.subr.bf16.mxu0 %v1153
    %1219 = vmatpush1.bf16.msra.mxu0 %v1152
    %1220 = vmatprep.subr.bf16.mxu0 %v1156
    %1221 = vmatpush1.bf16.msra.mxu0 %v1155
    %1222 = vmatprep.subr.bf16.mxu0 %v1159
    %1223 = vmatpush1.bf16.msra.mxu0 %v1158
    %1224 = vmatprep.subr.bf16.mxu0 %v1162
    %1225 = vmatpush1.bf16.msra.mxu0 %v1161
    %1226 = vmatprep.subr.bf16.mxu0 %v1165
    %1227 = vmatpush1.bf16.msra.mxu0 %v1164
    %1228 = vmatprep.subr.bf16.mxu0 %v1168
    %1229 = vmatpush1.bf16.msra.mxu0 %v1167
    %1230 = vmatprep.subr.bf16.mxu0 %v1171
    %1231 = vmatpush1.bf16.msra.mxu0 %v1170
    %1232 = vmatprep.subr.bf16.mxu0 %v1174
    %1233 = vmatpush1.bf16.msra.mxu0 %v1173
    %1234 = vmatprep.subr.bf16.mxu0 %v1177
    %1235 = vmatpush1.bf16.msra.mxu0 %v1176
    %1236 = vmatprep.subr.bf16.mxu0 %v1180
    %1237 = vmatpush1.bf16.msra.mxu0 %v1179
    %1238 = vmatprep.subr.bf16.mxu0 %v1183
    %1239 = vmatpush1.bf16.msra.mxu0 %v1182
    %1240 = vmatprep.subr.bf16.mxu0 %v1186
    %1241 = vmatpush1.bf16.msra.mxu0 %v1185
    %1242 = vmatprep.subr.bf16.mxu0 %v1189
    %1243 = vmatpush1.bf16.msra.mxu0 %v1188
    %1244 = vmatprep.subr.bf16.mxu0 %v1192
    %1245 = vmatpush1.bf16.msra.mxu0 %v1191
    %1246 = vmatprep.subr.bf16.mxu0 %v1195
    %1247 = vmatpush1.bf16.msra.mxu0 %v1194
    %1248 = vmatprep.mubr.bf16.mxu0 %v1213
    %1249 = vmatmul.mubr.bf16.gmra.mrb[0].mxu0 %v1212
    %v1250 = vpop.f32.mrb[0].mxu0
    %v1251 = vadd.f32 %v748, %v1250
    %v1252 = vpop.f32.mrb[0].mxu0
    %v1253 = vadd.f32 %v750, %v1252
    %v1254 = vpop.f32.mrb[0].mxu0
    %v1255 = vadd.f32 %v752, %v1254
    %v1256 = vpop.f32.mrb[0].mxu0
    %v1257 = vadd.f32 %v754, %v1256
    %1258 = vdwg.mxu0
    %1259 = vmatprep.subr.bf16.mxu0 0
    %1260 = vmatpush1.bf16.msra.mxu0 %v1151
    %1261 = vmatprep.subr.bf16.mxu0 0
    %1262 = vmatpush1.bf16.msra.mxu0 %v1154
    %1263 = vmatprep.subr.bf16.mxu0 0
    %1264 = vmatpush1.bf16.msra.mxu0 %v1157
    %1265 = vmatprep.subr.bf16.mxu0 0
    %1266 = vmatpush1.bf16.msra.mxu0 %v1160
    %1267 = vmatprep.subr.bf16.mxu0 0
    %1268 = vmatpush1.bf16.msra.mxu0 %v1163
    %1269 = vmatprep.subr.bf16.mxu0 0
    %1270 = vmatpush1.bf16.msra.mxu0 %v1166
    %1271 = vmatprep.subr.bf16.mxu0 0
    %1272 = vmatpush1.bf16.msra.mxu0 %v1169
    %1273 = vmatprep.subr.bf16.mxu0 0
    %1274 = vmatpush1.bf16.msra.mxu0 %v1172
    %1275 = vmatprep.subr.bf16.mxu0 0
    %1276 = vmatpush1.bf16.msra.mxu0 %v1175
    %1277 = vmatprep.subr.bf16.mxu0 0
    %1278 = vmatpush1.bf16.msra.mxu0 %v1178
    %1279 = vmatprep.subr.bf16.mxu0 0
    %1280 = vmatpush1.bf16.msra.mxu0 %v1181
    %1281 = vmatprep.subr.bf16.mxu0 0
    %1282 = vmatpush1.bf16.msra.mxu0 %v1184
    %1283 = vmatprep.subr.bf16.mxu0 0
    %1284 = vmatpush1.bf16.msra.mxu0 %v1187
    %1285 = vmatprep.subr.bf16.mxu0 0
    %1286 = vmatpush1.bf16.msra.mxu0 %v1190
    %1287 = vmatprep.subr.bf16.mxu0 0
    %1288 = vmatpush1.bf16.msra.mxu0 %v1193
    %1289 = vmatprep.subr.bf16.mxu0 0
    %1290 = vmatpush1.bf16.msra.mxu0 %v1196
    %1291 = vmatprep.mubr.bf16.mxu0 %v1213
    %1292 = vmatmul.mubr.bf16.gmra.mrb[0].mxu0 %v1212
    %v1293 = vpop.f32.mrb[0].mxu0
    %v1294 = vadd.f32 %v1047, %v1293
    %v1295 = vpop.f32.mrb[0].mxu0
    %v1296 = vpop.f32.mrb[0].mxu0
    %v1297 = vadd.f32 %v1050, %v1296
    %v1298 = vpop.f32.mrb[0].mxu0
    %1299 = vdwg.mxu0
    %1301 = vset.pattern.permute.xlu0 0
    %1302 = vperm.xlu0 %1301, %v1199
    %v1303 = vpop.permute.xlu0 %1302
    %1306 = vset.pattern.permute.xlu0 0
    %1307 = vperm.xlu0 %1306, %v1200
    %v1308 = vpop.permute.xlu0 %1307
    %v1310 = vadd.f32 %v1251, %v1303
    %v1311 = vadd.f32 %v1253, %v1303
    %v1312 = vadd.f32 %v1294, %v1303
    %v1313 = vadd.f32 %v1255, %v1308
    %v1314 = vadd.f32 %v1257, %v1308
    %v1315 = vadd.f32 %v1297, %v1308
    %v1316 = vmax.f32 %v1310, 0.0
    %v1317 = vmax.f32 %v1311, 0.0
    %v1318 = vmax.f32 %v1312, 0.0
    %v1319 = vmax.f32 %v1313, 0.0
    %v1320 = vmax.f32 %v1314, 0.0
    %v1321 = vmax.f32 %v1315, 0.0
    %v1322 = vld [vmem:[%s3] sm:$0xf]
    %v1323 = vld [vmem:[%s3 + $0x4] sm:$0xf]
    %v1324 = vpack.c.bf16 %v1319, %v1316
    %v1325 = vpack.c.bf16 %v1320, %v1317
    %v1326 = vpack.c.bf16 %v1321, %v1318
    %1328 = vset.pattern.permute.xlu0 0
    %1329 = vperm.xlu0 %1328, %v1201
    %v1330 = vpop.permute.xlu0 %1329
    %1333 = vset.pattern.permute.xlu0 0
    %1334 = vperm.xlu0 %1333, %v1202
    %v1335 = vpop.permute.xlu0 %1334
    %v1339 = vunpack.c.l.b16 %v1322
    %v1340 = vunpack.c.l.b16 %v1323
    %v1341 = vpack.c.b16 %v1340, %v1339
    %vm1342 = vcmask 130048
    %v1344 = vsel %vm1342, %v1341, 0
    %1346 = vmatprep.subr.bf16.mxu0 %v1325
    %1347 = vmatpush1.bf16.msra.mxu0 %v1324
    %1348 = vmatprep.subr.bf16.mxu0 0
    %1349 = vmatpush1.bf16.msra.mxu0 0
    %1350 = vmatprep.subr.bf16.mxu0 0
    %1351 = vmatpush1.bf16.msra.mxu0 0
    %1352 = vmatprep.subr.bf16.mxu0 0
    %1353 = vmatpush1.bf16.msra.mxu0 0
    %1354 = vmatprep.subr.bf16.mxu0 0
    %1355 = vmatpush1.bf16.msra.mxu0 0
    %1356 = vmatprep.subr.bf16.mxu0 0
    %1357 = vmatpush1.bf16.msra.mxu0 0
    %1358 = vmatprep.subr.bf16.mxu0 0
    %1359 = vmatpush1.bf16.msra.mxu0 0
    %1360 = vmatprep.subr.bf16.mxu0 0
    %1361 = vmatpush1.bf16.msra.mxu0 0
    %1362 = vmatprep.subr.bf16.mxu0 0
    %1363 = vmatpush1.bf16.msra.mxu0 0
    %1364 = vmatprep.subr.bf16.mxu0 0
    %1365 = vmatpush1.bf16.msra.mxu0 0
    %1366 = vmatprep.subr.bf16.mxu0 0
    %1367 = vmatpush1.bf16.msra.mxu0 0
    %1368 = vmatprep.subr.bf16.mxu0 0
    %1369 = vmatpush1.bf16.msra.mxu0 0
    %1370 = vmatprep.subr.bf16.mxu0 0
    %1371 = vmatpush1.bf16.msra.mxu0 0
    %1372 = vmatprep.subr.bf16.mxu0 0
    %1373 = vmatpush1.bf16.msra.mxu0 0
    %1374 = vmatprep.subr.bf16.mxu0 0
    %1375 = vmatpush1.bf16.msra.mxu0 0
    %1376 = vmatprep.subr.bf16.mxu0 0
    %1377 = vmatpush1.bf16.msra.mxu0 0
    %1378 = vmatprep.mubr.bf16.mxu0 0
    %1379 = vmatmul.mubr.bf16.gmra.mrb[0].mxu0 %v1344
    %v1380 = vpop.f32.mrb[0].mxu0
    %v1381 = vadd.f32 %v1330, %v1380
    %v1382 = vpop.f32.mrb[0].mxu0
    %v1383 = vadd.f32 %v1330, %v1382
    %v1384 = vpop.f32.mrb[0].mxu0
    %v1385 = vadd.f32 %v1335, %v1384
    %v1386 = vpop.f32.mrb[0].mxu0
    %v1387 = vadd.f32 %v1335, %v1386
    %1388 = vdwg.mxu0
    %1389 = vmatprep.subr.bf16.mxu0 0
    %1390 = vmatpush1.bf16.msra.mxu0 %v1326
    %1391 = vmatprep.subr.bf16.mxu0 0
    %1392 = vmatpush1.bf16.msra.mxu0 0
    %1393 = vmatprep.subr.bf16.mxu0 0
    %1394 = vmatpush1.bf16.msra.mxu0 0
    %1395 = vmatprep.subr.bf16.mxu0 0
    %1396 = vmatpush1.bf16.msra.mxu0 0
    %1397 = vmatprep.subr.bf16.mxu0 0
    %1398 = vmatpush1.bf16.msra.mxu0 0
    %1399 = vmatprep.subr.bf16.mxu0 0
    %1400 = vmatpush1.bf16.msra.mxu0 0
    %1401 = vmatprep.subr.bf16.mxu0 0
    %1402 = vmatpush1.bf16.msra.mxu0 0
    %1403 = vmatprep.subr.bf16.mxu0 0
    %1404 = vmatpush1.bf16.msra.mxu0 0
    %1405 = vmatprep.subr.bf16.mxu0 0
    %1406 = vmatpush1.bf16.msra.mxu0 0
    %1407 = vmatprep.subr.bf16.mxu0 0
    %1408 = vmatpush1.bf16.msra.mxu0 0
    %1409 = vmatprep.subr.bf16.mxu0 0
    %1410 = vmatpush1.bf16.msra.mxu0 0
    %1411 = vmatprep.subr.bf16.mxu0 0
    %1412 = vmatpush1.bf16.msra.mxu0 0
    %1413 = vmatprep.subr.bf16.mxu0 0
    %1414 = vmatpush1.bf16.msra.mxu0 0
    %1415 = vmatprep.subr.bf16.mxu0 0
    %1416 = vmatpush1.bf16.msra.mxu0 0
    %1417 = vmatprep.subr.bf16.mxu0 0
    %1418 = vmatpush1.bf16.msra.mxu0 0
    %1419 = vmatprep.subr.bf16.mxu0 0
    %1420 = vmatpush1.bf16.msra.mxu0 0
    %1421 = vmatprep.mubr.bf16.mxu0 0
    %1422 = vmatmul.mubr.bf16.gmra.mrb[0].mxu0 %v1344
    %v1423 = vpop.f32.mrb[0].mxu0
    %v1424 = vadd.f32 %v1330, %v1423
    %v1425 = vpop.f32.mrb[0].mxu0
    %v1426 = vpop.f32.mrb[0].mxu0
    %v1427 = vadd.f32 %v1335, %v1426
    %v1428 = vpop.f32.mrb[0].mxu0
    %1429 = vdwg.mxu0
    %v1430 = vmax.f32 %v1381, 0.0
    %v1431 = vmax.f32 %v1383, 0.0
    %v1432 = vmax.f32 %v1424, 0.0
    %v1433 = vmax.f32 %v1385, 0.0
    %v1434 = vmax.f32 %v1387, 0.0
    %v1435 = vmax.f32 %v1427, 0.0
    %1437 = vset.pattern.permute.xlu0 0
    %1438 = vperm.xlu0 %1437, %v1203
    %v1439 = vpop.permute.xlu0 %1438
    %1442 = vset.pattern.permute.xlu0 0
    %1443 = vperm.xlu0 %1442, %v1204
    %v1444 = vpop.permute.xlu0 %1443
    %v1446 = vmul.f32 %v1430, %v1439
    %v1447 = vmul.f32 %v1431, %v1439
    %v1448 = vmul.f32 %v1432, %v1439
    %v1449 = vmul.f32 %v1433, %v1444
    %v1450 = vmul.f32 %v1434, %v1444
    %v1451 = vmul.f32 %v1435, %v1444
    %v1452 = vadd.f32 %v1446, %v1449
    %v1453 = vrot.slane %v1452, 4
    %v1454 = vadd.f32 %v1452, %v1453
    %v1455 = vrot.slane %v1454, 2
    %v1456 = vadd.f32 %v1454, %v1455
    %v1457 = vrot.slane %v1456, 1
    %v1458 = vadd.f32 %v1456, %v1457
    %v1459 = vadd.f32 %v1447, %v1450
    %v1460 = vrot.slane %v1459, 4
    %v1461 = vadd.f32 %v1459, %v1460
    %v1462 = vrot.slane %v1461, 2
    %v1463 = vadd.f32 %v1461, %v1462
    %v1464 = vrot.slane %v1463, 1
    %v1465 = vadd.f32 %v1463, %v1464
    %v1466 = vadd.f32 %v1448, %v1451
    %v1467 = vrot.slane %v1466, 4
    %v1468 = vadd.f32 %v1466, %v1467
    %v1469 = vrot.slane %v1468, 2
    %v1470 = vadd.f32 %v1468, %v1469
    %v1471 = vrot.slane %v1470, 1
    %v1472 = vadd.f32 %v1470, %v1471
    %1474 = vset.pattern.permute.xlu0 0
    %1475 = vperm.xlu0 %1474, %v1205
    %v1476 = vpop.permute.xlu0 %1475
    %v1478 = vadd.f32 %v1458, %v1476
    %v1479 = vadd.f32 %v1465, %v1476
    %v1480 = vadd.f32 %v1472, %v1476
    %v1481 = vxor.u32 %v1478, 2147483648
    %v1482 = vxor.u32 %v1479, 2147483648
    %v1483 = vxor.u32 %v1480, 2147483648
    %v1484 = vmul.f32 %v1481, 1.442695
    %v1485 = vpow.pop %v1484
    %v1486 = vmul.f32 %v1482, 1.442695
    %v1487 = vpow.pop %v1486
    %v1488 = vmul.f32 %v1483, 1.442695
    %v1489 = vpow.pop %v1488
    %v1490 = vadd.f32 %v1485, 1.0
    %v1491 = vadd.f32 %v1487, 1.0
    %v1492 = vadd.f32 %v1489, 1.0
    %v1493 = vrcp.pop %v1490
    %v1494 = vmul.f32 1.0, %v1493
    %v1495 = vrcp.pop %v1491
    %v1496 = vmul.f32 1.0, %v1495
    %v1497 = vrcp.pop %v1492
    %v1498 = vmul.f32 1.0, %v1497
    %v1502 = vcombine.low %v1494, %v1496
    %v1504 = vunpack.c.l.s4 1966171168
    %v1505 = vunpack.c.0.s8 %v1504
    %v1506 = vlaneseq
    %v1507 = vshrl.u32 %v1506, 7
    %v1508 = vsub.s32 %v1505, %v1507
    %v1509 = vrot.slane %v1502, %v1508
    %v1511 = vunpack.c.l.s4 1966171168
    %v1512 = vunpack.c.0.s8 %v1511
    %v1513 = vlaneseq
    %v1514 = vshrl.u32 %v1513, 7
    %v1515 = vsub.s32 %v1512, %v1514
    %v1516 = vrot.slane %v1498, %v1515
    %v1517 = vcombine.low %v1509, %v1516
    %v1519 = vunpack.c.l.s4 1966171168
    %v1520 = vunpack.c.0.s8 %v1519
    %v1521 = vlaneseq
    %v1522 = vshrl.u32 %v1521, 7
    %v1523 = vsub.s32 %v1520, %v1522
    %v1524 = vrot.slane %v1517, %v1523
    %v1526 = vlaneseq
    %vm1527 = vcmp.ge.s32.totalorder %v1526, 0
    %vm1528 = vcmp.lt.s32.totalorder %v1526, 384
    %vm1529 = vmand %vm1527, %vm1528
    %1530 = vst.msk [vmem:[#allocation2] sm:$0x7] %vm1529, %v1524
    // Predicated region
    $region22: #{tpu_custom_call.1} parent=1 // pred_check
      _
    $region23: #{tpu_custom_call.1} parent=1 // pred_check_branch
      %1532 = sbr.rel (0) target = $region25
    $region24: #{tpu_custom_call.1} parent=1 // pred_region
      %s1534 = ssub.s32 48, 48
      %1535 = vsyncadd [#allocation3], %s1534
      %s1537 = sshll.u32 [#allocation2], 4
      %s1538 = int_to_ptr.vmem [resolvable:$true] %s1537
      %1540 = dma.vmem_to_hbm [thread:$0]  %s1538, 48, %s5, [#allocation3]
    $region25: #{tpu_custom_call.1} parent=1 // pred_fallthru
      _
    // Predicated region
    $region26: #{tpu_custom_call.1} parent=1 // pred_check
      _
    $region27: #{tpu_custom_call.1} parent=1 // pred_check_branch
      %1542 = sbr.rel (0) target = $region29
    $region28: #{tpu_custom_call.1} parent=1 // pred_region
      %1543 = dma.done [#allocation3], 48
    $region29: #{tpu_custom_call.1} parent=1 // pred_fallthru
      _
    %1544 = vsyncpa [#allocation3], 1

</llo_original>
